<compile_context>
chip_gen: v6e
topology: v6e:2x2x1
jax: 0.10.0
libtpu: 0.0.40
codegen_flags: <defaults>
</compile_context>

<pallas_src>
import jax
import jax.numpy as jnp
from jax.experimental import pallas as pl
from jax.experimental.pallas import tpu as pltpu


_INPUT_SIZE = 89
_HPAD = 128                 # lane-dense padded hidden width
_OUT = 3
_PALLAS_MIN_BATCH = 256     # below this, XLA's fused dot chain wins on launch cost
_DEFAULT_TILE_B = 2048      # max rows per grid step (review: amortize step overhead)


def _round_up(n, m):
    return ((n + m - 1) // m) * m


def _cdiv(a, b):
    return (a + b - 1) // b


def _default_relu_in_bf16():
    """bf16 elementwise only where the VPU has a bf16 path (v6e/v7x);
    v5e and older keep the f32 ReLU-then-cast order."""
    try:
        kind = jax.devices()[0].device_kind.lower()
    except Exception:
        return False
    for old in ("v2", "v3", "v4", "v5 lite", "v5e", "v5litepod"):
        if old in kind:
            return False
    return True


# ----------------------------------------------------------------------------
# Kernel
# ----------------------------------------------------------------------------
def make_snake_mlp_kernel(relu_in_bf16):
    def snake_mlp_kernel(x_ref, w1_ref, b1_ref, w2_ref, w3_ref, wo_ref, o_ref):
        # One batch tile per grid step.  Weights/bias have constant index_maps
        # so they are DMA'd once and stay VMEM-resident; only x and o stream.
        def act(acc_f32):
            # Dropout(p=0) -> identity; only ReLU remains.
            if relu_in_bf16:
                # v6e/v7x: ReLU in bf16 (16x128 vreg packing, half the passes).
                return jnp.maximum(acc_f32.astype(jnp.bfloat16), 0)
            # v5e: no bf16 VALU -> f32 ReLU, then cast once for the next matmul.
            return jnp.maximum(acc_f32, 0.0).astype(jnp.bfloat16)

        # In-kernel bf16 cast of x (cheap VPU op, hidden under the MXU).
        x = x_ref[...].astype(jnp.bfloat16)                           # (TB, 89)

        # layer1: explicit b1 add (x has no spare constant-1 lane); b1 lane 127
        # is 1.0, creating the bias lane used by the folded b2/b3/bo below.
        h = act(jnp.dot(x, w1_ref[...],
                        preferred_element_type=jnp.float32) + b1_ref[...])
        # layer2 / layer3: biases folded into weight row 127 (bias lane).
        h = act(jnp.dot(h, w2_ref[...], preferred_element_type=jnp.float32))
        h = act(jnp.dot(h, w3_ref[...], preferred_element_type=jnp.float32))
        # output: bo folded into weight row 127.
        o_ref[...] = jnp.dot(h, wo_ref[...], preferred_element_type=jnp.float32)

    return snake_mlp_kernel


def _pallas_forward(x, packed, tile_b, relu_in_bf16):
    B = x.shape[0]
    w1, b1, w2, w3, wo = packed

    def resident(arr):                       # VMEM-resident across all grid steps
        return pl.BlockSpec(arr.shape, lambda *_i, _nd=arr.ndim: (0,) * _nd)

    return pl.pallas_call(
        make_snake_mlp_kernel(relu_in_bf16),
        out_shape=jax.ShapeDtypeStruct((B, _OUT), jnp.float32),
        grid=(pl.cdiv(B, tile_b),),
        in_specs=[pl.BlockSpec((tile_b, _INPUT_SIZE), lambda i: (i, 0))]
                 + [resident(a) for a in (w1, b1, w2, w3, wo)],
        out_specs=pl.BlockSpec((tile_b, _OUT), lambda i: (i, 0)),
        compiler_params=pltpu.CompilerParams(
            dimension_semantics=("parallel",)),   # megacore batch split on v7x
    )(x, w1, b1, w2, w3, wo)


def _choose_tile_b(B, max_tile):
    """Pick a tile so the grid has >= 2 (and an even number of) near-equal
    steps -- keeps both v7x TensorCores busy -- each a multiple of 8 rows."""
    n_min = _cdiv(B, max_tile)
    n_steps = max(2, n_min + (n_min % 2))          # even, >= 2
    return _round_up(_cdiv(B, n_steps), 8)


# ----------------------------------------------------------------------------
# Parameter init / one-time packing
# ----------------------------------------------------------------------------
def init_params(key):
    """Deterministic init mimicking nn.Linear's U(-1/sqrt(fan_in), 1/sqrt(fan_in))."""
    def linear(key, fan_in, fan_out):
        kw, kb = jax.random.split(key)
        bound = 1.0 / jnp.sqrt(jnp.float32(fan_in))
        w = jax.random.uniform(kw, (fan_in, fan_out), jnp.float32, -bound, bound)
        b = jax.random.uniform(kb, (1, fan_out), jnp.float32, -bound, bound)
        return w, b

    k1, k2, k3, k4 = jax.random.split(key, 4)
    w1, b1 = linear(k1, _INPUT_SIZE, 64)
    w2, b2 = linear(k2, 64, 64)
    w3, b3 = linear(k3, 64, 32)
    wo, bo = linear(k4, 128, _OUT)   # declared shape of self.output in the module
    return (w1, b1, w2, b2, w3, b3, wo, bo)


def pack_params(raw_params):
    """One-time packing (off the hot path):
      * zero-pad hidden widths to lane-dense 128,
      * fold b2 / b3 / bo into weight row 127 via a constant-1 bias lane
        (b1 lane 127 = 1.0, each w row127/col127 = 1.0 propagates it),
      * slice the usable first 32 rows of the declared (128,3) output weight,
      * cast matmul weights to bf16 (b1 stays f32)."""
    w1, b1, w2, b2, w3, b3, wo_full, bo = raw_params

    def pad_to(a, shape):
        return jnp.pad(a, [(0, t - s) for s, t in zip(a.shape, shape)])

    # layer1: pad output lanes to 128; lane 127 of b1 carries the constant 1.
    w1p = pad_to(w1, (_INPUT_SIZE, _HPAD))                        # (89, 128)
    b1p = pad_to(b1, (1, _HPAD)).at[0, _HPAD - 1].set(1.0)        # (1, 128)

    # layer2: b2 folded into row 127; [127,127]=1 propagates the bias lane.
    w2p = pad_to(w2, (_HPAD, _HPAD))                              # (128, 128)
    w2p = w2p.at[_HPAD - 1, :64].set(b2[0])
    w2p = w2p.at[_HPAD - 1, _HPAD - 1].set(1.0)

    # layer3: b3 folded into row 127; [127,127]=1 propagates the bias lane.
    w3p = pad_to(w3, (_HPAD, _HPAD))                              # (128, 128)
    w3p = w3p.at[_HPAD - 1, :32].set(b3[0])
    w3p = w3p.at[_HPAD - 1, _HPAD - 1].set(1.0)

    # TODO(synk): see module-level note -- only the first 32 input rows of the
    # declared (128, 3) output weight can ever be used given layer3's 32-dim
    # output; bo folded into row 127 (bias lane).
    wop = pad_to(wo_full[:32, :], (_HPAD, _OUT))                  # (128, 3)
    wop = wop.at[_HPAD - 1, :].set(bo[0])

    bf = lambda a: a.astype(jnp.bfloat16)
    return (bf(w1p), b1p.astype(jnp.float32), bf(w2p), bf(w3p), bf(wop))


# ----------------------------------------------------------------------------
# References
# ----------------------------------------------------------------------------
def _reference_forward_packed(x, packed):
    """Mirrors the kernel numerics (packed bf16 weights, folded biases,
    f32 accumulation).  Also used as the small-batch bypass."""
    w1, b1, w2, w3, wo = packed
    h = jnp.maximum(jnp.dot(x.astype(jnp.bfloat16), w1,
                            preferred_element_type=jnp.float32) + b1, 0.0)
    h = jnp.maximum(jnp.dot(h.astype(jnp.bfloat16), w2,
                            preferred_element_type=jnp.float32), 0.0)
    h = jnp.maximum(jnp.dot(h.astype(jnp.bfloat16), w3,
                            preferred_element_type=jnp.float32), 0.0)
    return jnp.dot(h.astype(jnp.bfloat16), wo,
                   preferred_element_type=jnp.float32)


def reference_forward_f32(x, raw_params):
    """Full-precision reference of the original module semantics."""
    w1, b1, w2, b2, w3, b3, wo_full, bo = raw_params
    h = jnp.maximum(x @ w1 + b1, 0.0)
    h = jnp.maximum(h @ w2 + b2, 0.0)
    h = jnp.maximum(h @ w3 + b3, 0.0)
    return h @ wo_full[:32, :] + bo


# ----------------------------------------------------------------------------
# Public forward
# ----------------------------------------------------------------------------
def snake_ai_forward(x, packed_params, *, tile_b=_DEFAULT_TILE_B,
                     force_pallas=False, relu_in_bf16=None):
    """x: (B, 89) float32, or (89,) for the torch `is_single` path."""
    if relu_in_bf16 is None:
        relu_in_bf16 = _default_relu_in_bf16()

    is_single = x.ndim == 1
    if is_single:
        x = x[None, :]
    B = x.shape[0]

    if B < _PALLAS_MIN_BATCH and not force_pallas:
        # ~25 KFLOP/row MLP: at small B the pallas_call fixed cost dominates on
        # every TPU generation -- let XLA's fused dot chain handle it.
        out = _reference_forward_packed(x, packed_params)
    else:
        tb = _choose_tile_b(B, tile_b)
        out = _pallas_forward(x, packed_params, tb, relu_in_bf16)

    return out[0] if is_single else out


# ----------------------------------------------------------------------------
if __name__ == "__main__":
    key = jax.random.PRNGKey(0)
    kp, kx = jax.random.split(key)

    raw = init_params(kp)
    packed = pack_params(raw)   # one-time packing, off the hot path

    # Batch just large enough to take the Pallas path, with a partial last
    # tile (1037 -> two grid steps of 520 + 517 rows) to exercise the cdiv
    # grid, the even >=2-step v7x split, and boundary handling.
    B = 1037
    x = jax.random.normal(kx, (B, _INPUT_SIZE), dtype=jnp.float32)

    out = jax.block_until_ready(snake_ai_forward(x, packed))
    assert out.shape == (B, _OUT)

    # Exact-structure reference (same packed weights / precisions).
    ref = _reference_forward_packed(x, packed)
    assert jnp.allclose(out, ref, atol=1e-4, rtol=1e-4), \
        float(jnp.max(jnp.abs(out - ref)))

    # Loose sanity check against the full-f32 original-module semantics
    # (bf16 weight/bias storage introduces <~1% error, well under this bound).
    ref_f32 = reference_forward_f32(x, raw)
    assert jnp.allclose(out, ref_f32, atol=5e-2, rtol=5e-2), \
        float(jnp.max(jnp.abs(out - ref_f32)))

    # Single-sample path (torch's is_single branch) -- plain-JAX bypass.
    out1 = jax.block_until_ready(snake_ai_forward(x[0], packed))
    assert out1.shape == (_OUT,)
    assert jnp.allclose(out1, ref[0], atol=1e-4, rtol=1e-4)

    print("KERNEL_OK")
</pallas_src>

<mosaic_0001>
module attributes {stable_mosaic.version = 11 : i64} {
  func.func @snake_mlp_kernel(%arg0: i32, %arg1: memref<520x89xf32, #tpu.memory_space<vmem>>, %arg2: memref<89x128xbf16, #tpu.memory_space<vmem>>, %arg3: memref<1x128xf32, #tpu.memory_space<vmem>>, %arg4: memref<128x128xbf16, #tpu.memory_space<vmem>>, %arg5: memref<128x128xbf16, #tpu.memory_space<vmem>>, %arg6: memref<128x3xbf16, #tpu.memory_space<vmem>>, %arg7: memref<520x3xf32, #tpu.memory_space<vmem>>) attributes {dimension_semantics = [#tpu.dimension_semantics<parallel>], iteration_bounds = array<i64: 2>, scalar_prefetch = 0 : i64, scratch_operands = 0 : i64, tpu.core_type = #tpu.core_type<tc>, window_params = [{transform_indices = @transform_0, window_bounds = array<i64: 520, 89>}, {pipeline_mode = #tpu.pipeline_mode<synchronous>, transform_indices = @transform_1, window_bounds = array<i64: 89, 128>}, {pipeline_mode = #tpu.pipeline_mode<synchronous>, transform_indices = @transform_2, window_bounds = array<i64: 1, 128>}, {pipeline_mode = #tpu.pipeline_mode<synchronous>, transform_indices = @transform_3, window_bounds = array<i64: 128, 128>}, {pipeline_mode = #tpu.pipeline_mode<synchronous>, transform_indices = @transform_4, window_bounds = array<i64: 128, 128>}, {pipeline_mode = #tpu.pipeline_mode<synchronous>, transform_indices = @transform_5, window_bounds = array<i64: 128, 3>}, {transform_indices = @transform_6, window_bounds = array<i64: 520, 3>}]} {
    %c0 = arith.constant 0 : index
    %c0_0 = arith.constant 0 : index
    %0 = vector.load %arg1[%c0, %c0_0] : memref<520x89xf32, #tpu.memory_space<vmem>>, vector<520x89xf32>
    %1 = arith.truncf %0 : vector<520x89xf32> to vector<520x89xbf16>
    %c0_1 = arith.constant 0 : index
    %c0_2 = arith.constant 0 : index
    %2 = vector.load %arg2[%c0_1, %c0_2] : memref<89x128xbf16, #tpu.memory_space<vmem>>, vector<89x128xbf16>
    %cst = arith.constant dense<0.000000e+00> : vector<520x128xf32>
    %3 = tpu.matmul %1, %2, %cst {dimension_numbers = #tpu.dot_dimension_numbers<[1], [0], [0], [1], [0, 0, 1, 1], [], []>} : vector<520x89xbf16>, vector<89x128xbf16>, vector<520x128xf32> -> vector<520x128xf32>
    %c0_3 = arith.constant 0 : index
    %c0_4 = arith.constant 0 : index
    %4 = vector.load %arg3[%c0_3, %c0_4] : memref<1x128xf32, #tpu.memory_space<vmem>>, vector<1x128xf32>
    %5 = vector.broadcast %4 : vector<1x128xf32> to vector<520x128xf32>
    %6 = arith.addf %3, %5 : vector<520x128xf32>
    %7 = arith.truncf %6 : vector<520x128xf32> to vector<520x128xbf16>
    %cst_5 = arith.constant 0.000000e+00 : bf16
    %8 = vector.broadcast %cst_5 : bf16 to vector<520x128xbf16>
    %9 = arith.maximumf %7, %8 : vector<520x128xbf16>
    %c0_6 = arith.constant 0 : index
    %c0_7 = arith.constant 0 : index
    %10 = vector.load %arg4[%c0_6, %c0_7] : memref<128x128xbf16, #tpu.memory_space<vmem>>, vector<128x128xbf16>
    %cst_8 = arith.constant dense<0.000000e+00> : vector<520x128xf32>
    %11 = tpu.matmul %9, %10, %cst_8 {dimension_numbers = #tpu.dot_dimension_numbers<[1], [0], [0], [1], [0, 0, 1, 1], [], []>} : vector<520x128xbf16>, vector<128x128xbf16>, vector<520x128xf32> -> vector<520x128xf32>
    %12 = arith.truncf %11 : vector<520x128xf32> to vector<520x128xbf16>
    %cst_9 = arith.constant 0.000000e+00 : bf16
    %13 = vector.broadcast %cst_9 : bf16 to vector<520x128xbf16>
    %14 = arith.maximumf %12, %13 : vector<520x128xbf16>
    %c0_10 = arith.constant 0 : index
    %c0_11 = arith.constant 0 : index
    %15 = vector.load %arg5[%c0_10, %c0_11] : memref<128x128xbf16, #tpu.memory_space<vmem>>, vector<128x128xbf16>
    %cst_12 = arith.constant dense<0.000000e+00> : vector<520x128xf32>
    %16 = tpu.matmul %14, %15, %cst_12 {dimension_numbers = #tpu.dot_dimension_numbers<[1], [0], [0], [1], [0, 0, 1, 1], [], []>} : vector<520x128xbf16>, vector<128x128xbf16>, vector<520x128xf32> -> vector<520x128xf32>
    %17 = arith.truncf %16 : vector<520x128xf32> to vector<520x128xbf16>
    %cst_13 = arith.constant 0.000000e+00 : bf16
    %18 = vector.broadcast %cst_13 : bf16 to vector<520x128xbf16>
    %19 = arith.maximumf %17, %18 : vector<520x128xbf16>
    %c0_14 = arith.constant 0 : index
    %c0_15 = arith.constant 0 : index
    %20 = vector.load %arg6[%c0_14, %c0_15] : memref<128x3xbf16, #tpu.memory_space<vmem>>, vector<128x3xbf16>
    %cst_16 = arith.constant dense<0.000000e+00> : vector<520x3xf32>
    %21 = tpu.matmul %19, %20, %cst_16 {dimension_numbers = #tpu.dot_dimension_numbers<[1], [0], [0], [1], [0, 0, 1, 1], [], []>} : vector<520x128xbf16>, vector<128x3xbf16>, vector<520x3xf32> -> vector<520x3xf32>
    %c0_17 = arith.constant 0 : index
    %c0_18 = arith.constant 0 : index
    %22 = vector.load %arg7[%c0_17, %c0_18] : memref<520x3xf32, #tpu.memory_space<vmem>>, vector<520x3xf32>
    tpu.vector_store %arg7[%c0_17, %c0_18], %21 {strides = array<i32>} : memref<520x3xf32, #tpu.memory_space<vmem>>, vector<520x3xf32>,
    return
  }
  func.func @transform_0(%arg0: i32) -> (i32, i32) {
    %c0_i32 = arith.constant 0 : i32
    %c0_i32_0 = arith.constant 0 : i32
    return %arg0, %c0_i32 : i32, i32
  }
  func.func @transform_1(%arg0: i32) -> (i32, i32) {
    %c0_i32 = arith.constant 0 : i32
    %c0_i32_0 = arith.constant 0 : i32
    %c0_i32_1 = arith.constant 0 : i32
    return %c0_i32, %c0_i32_0 : i32, i32
  }
  func.func @transform_2(%arg0: i32) -> (i32, i32) {
    %c0_i32 = arith.constant 0 : i32
    %c0_i32_0 = arith.constant 0 : i32
    %c0_i32_1 = arith.constant 0 : i32
    return %c0_i32, %c0_i32_0 : i32, i32
  }
  func.func @transform_3(%arg0: i32) -> (i32, i32) {
    %c0_i32 = arith.constant 0 : i32
    %c0_i32_0 = arith.constant 0 : i32
    %c0_i32_1 = arith.constant 0 : i32
    return %c0_i32, %c0_i32_0 : i32, i32
  }
  func.func @transform_4(%arg0: i32) -> (i32, i32) {
    %c0_i32 = arith.constant 0 : i32
    %c0_i32_0 = arith.constant 0 : i32
    %c0_i32_1 = arith.constant 0 : i32
    return %c0_i32, %c0_i32_0 : i32, i32
  }
  func.func @transform_5(%arg0: i32) -> (i32, i32) {
    %c0_i32 = arith.constant 0 : i32
    %c0_i32_0 = arith.constant 0 : i32
    %c0_i32_1 = arith.constant 0 : i32
    return %c0_i32, %c0_i32_0 : i32, i32
  }
  func.func @transform_6(%arg0: i32) -> (i32, i32) {
    %c0_i32 = arith.constant 0 : i32
    %c0_i32_0 = arith.constant 0 : i32
    return %arg0, %c0_i32 : i32, i32
  }
}

</mosaic_0001>

<llo_original>
// kernel: tpu_custom_call.1
$region0: #{tpu_custom_call.1}
  #allocation0 [shape = 'u32[]', space=smem, size = 0x4, offset = 0x4, fixed_abs, tag = 'smem constant byte address 0x4 - core index']
  #allocation1 [shape = 'u32[144,128]{1,0:T(1,128)}', space=vmem, size = 0x12000, scoped, tag = 'internal scratch']
  %s0 = inlined_call_operand.vmem [shape: f32[1037,89], index: 0, kind: input, shape index: {}]
  %s1 = inlined_call_operand.vmem [shape: bf16[89,128], index: 1, kind: input, shape index: {}]
  %s2 = inlined_call_operand.vmem [shape: f32[1,128], index: 2, kind: input, shape index: {}]
  %s3 = inlined_call_operand.vmem [shape: bf16[128,128], index: 3, kind: input, shape index: {}]
  %s4 = inlined_call_operand.vmem [shape: bf16[128,128], index: 4, kind: input, shape index: {}]
  %s5 = inlined_call_operand.vmem [shape: bf16[128,3], index: 5, kind: input, shape index: {}]
  %s6 = inlined_call_operand.vmem [shape: f32[1037,3], index: 6, kind: output, shape index: {}]
  %s7 = sld [smem:[#allocation0]]
  $region57: #{tpu_custom_call.1} parent=0
    _
  %s9 = ssub.s32 1, %s7
  %s10 = scalar_select 0, %s9, %s7
  loop: start=0, step=1, limit=4
  $region2: #{tpu_custom_call.1} parent=0 // loop_pre_header
    _
  $region3: #{tpu_custom_call.1} parent=0 // loop_header
    %s12 = sphi 0, %s16
    %p13 = scmp.ge.s32.totalorder %s12, 4
    %s22 = sphi 0, %s24
    %s25 = sphi 0, %s22
    %s26 = sphi 0, %s25
    %s42 = sphi 0, %s26
    %s46 = sphi 0, %s46
    %s48 = sphi 0, %s46
    %s49 = sphi 0, %s48
    %s63 = sphi 0, %s49
    %s67 = sphi 0, %s67
    %s69 = sphi 0, %s67
    %s70 = sphi 0, %s69
    %s84 = sphi 0, %s70
    %s88 = sphi 0, %s88
    %s90 = sphi 0, %s88
    %s91 = sphi 0, %s90
    %s105 = sphi 0, %s91
    %s109 = sphi 0, %s109
    %s111 = sphi 0, %s109
    %s112 = sphi 0, %s111
    %s126 = sphi 0, %s112
    %s130 = sphi 0, %s130
    %s132 = sphi 0, %s130
    %s133 = sphi 0, %s132
    %s147 = sphi 0, %s133
    %s153 = sphi 0, %s155
    %s156 = sphi 0, %s153
    %s157 = sphi 0, %s156
    %s173 = sphi 0, %s157
  $region4: #{tpu_custom_call.1} parent=0 // loop_header_branch
    %15 = sbr.rel (%p13) target = $region8
  $region5: #{tpu_custom_call.1} parent=0 // loop_body
    %s17 = ssub.s32 %s12, 1
    %s18 = ssub.s32 %s12, 2
    %s19 = sadd.s32 %s12, 1
    %s20 = ssub.s32 %s12, %s19
    %p21 = scmp.eq.s32.totalorder %s20, 0
    %s23 = sadd.s32 %s22, 1
    %s24 = scalar_select %p21, %s22, %s23
    %p27 = pneg %p21
    %p28 = scmp.eq.s32.totalorder %s12, 1
    %p29 = por %p27, %p28
    %p30 = scmp.ne.s32.totalorder %s22, %s25
    %p31 = scmp.eq.s32.totalorder %s12, 0
    %p32 = por %p30, %p31
    %p33 = scmp.ne.s32.totalorder %s22, %s25
    %p34 = scmp.eq.s32.totalorder %s17, 1
    %p35 = por %p33, %p34
    %p36 = scmp.ne.s32.totalorder %s25, %s26
    %p37 = scmp.eq.s32.totalorder %s17, 0
    %p38 = por %p36, %p37
    %p39 = scmp.ne.s32.totalorder %s25, %s26
    %p40 = scmp.eq.s32.totalorder %s18, 1
    %p41 = por %p39, %p40
    %p43 = scmp.ne.s32.totalorder %s26, %s42
    %p44 = scmp.eq.s32.totalorder %s18, 0
    %p45 = por %p43, %p44
    %s47 = sadd.s32 %s46, 1
    %p50 = scmp.eq.s32.totalorder %s12, 1
    %p51 = scmp.ne.s32.totalorder %s46, %s48
    %p52 = scmp.eq.s32.totalorder %s12, 0
    %p53 = por %p51, %p52
    %p54 = scmp.ne.s32.totalorder %s46, %s48
    %p55 = scmp.eq.s32.totalorder %s17, 1
    %p56 = por %p54, %p55
    %p57 = scmp.ne.s32.totalorder %s48, %s49
    %p58 = scmp.eq.s32.totalorder %s17, 0
    %p59 = por %p57, %p58
    %p60 = scmp.ne.s32.totalorder %s48, %s49
    %p61 = scmp.eq.s32.totalorder %s18, 1
    %p62 = por %p60, %p61
    %p64 = scmp.ne.s32.totalorder %s49, %s63
    %p65 = scmp.eq.s32.totalorder %s18, 0
    %p66 = por %p64, %p65
    %s68 = sadd.s32 %s67, 1
    %p71 = scmp.eq.s32.totalorder %s12, 1
    %p72 = scmp.ne.s32.totalorder %s67, %s69
    %p73 = scmp.eq.s32.totalorder %s12, 0
    %p74 = por %p72, %p73
    %p75 = scmp.ne.s32.totalorder %s67, %s69
    %p76 = scmp.eq.s32.totalorder %s17, 1
    %p77 = por %p75, %p76
    %p78 = scmp.ne.s32.totalorder %s69, %s70
    %p79 = scmp.eq.s32.totalorder %s17, 0
    %p80 = por %p78, %p79
    %p81 = scmp.ne.s32.totalorder %s69, %s70
    %p82 = scmp.eq.s32.totalorder %s18, 1
    %p83 = por %p81, %p82
    %p85 = scmp.ne.s32.totalorder %s70, %s84
    %p86 = scmp.eq.s32.totalorder %s18, 0
    %p87 = por %p85, %p86
    %s89 = sadd.s32 %s88, 1
    %p92 = scmp.eq.s32.totalorder %s12, 1
    %p93 = scmp.ne.s32.totalorder %s88, %s90
    %p94 = scmp.eq.s32.totalorder %s12, 0
    %p95 = por %p93, %p94
    %p96 = scmp.ne.s32.totalorder %s88, %s90
    %p97 = scmp.eq.s32.totalorder %s17, 1
    %p98 = por %p96, %p97
    %p99 = scmp.ne.s32.totalorder %s90, %s91
    %p100 = scmp.eq.s32.totalorder %s17, 0
    %p101 = por %p99, %p100
    %p102 = scmp.ne.s32.totalorder %s90, %s91
    %p103 = scmp.eq.s32.totalorder %s18, 1
    %p104 = por %p102, %p103
    %p106 = scmp.ne.s32.totalorder %s91, %s105
    %p107 = scmp.eq.s32.totalorder %s18, 0
    %p108 = por %p106, %p107
    %s110 = sadd.s32 %s109, 1
    %p113 = scmp.eq.s32.totalorder %s12, 1
    %p114 = scmp.ne.s32.totalorder %s109, %s111
    %p115 = scmp.eq.s32.totalorder %s12, 0
    %p116 = por %p114, %p115
    %p117 = scmp.ne.s32.totalorder %s109, %s111
    %p118 = scmp.eq.s32.totalorder %s17, 1
    %p119 = por %p117, %p118
    %p120 = scmp.ne.s32.totalorder %s111, %s112
    %p121 = scmp.eq.s32.totalorder %s17, 0
    %p122 = por %p120, %p121
    %p123 = scmp.ne.s32.totalorder %s111, %s112
    %p124 = scmp.eq.s32.totalorder %s18, 1
    %p125 = por %p123, %p124
    %p127 = scmp.ne.s32.totalorder %s112, %s126
    %p128 = scmp.eq.s32.totalorder %s18, 0
    %p129 = por %p127, %p128
    %s131 = sadd.s32 %s130, 1
    %p134 = scmp.eq.s32.totalorder %s12, 1
    %p135 = scmp.ne.s32.totalorder %s130, %s132
    %p136 = scmp.eq.s32.totalorder %s12, 0
    %p137 = por %p135, %p136
    %p138 = scmp.ne.s32.totalorder %s130, %s132
    %p139 = scmp.eq.s32.totalorder %s17, 1
    %p140 = por %p138, %p139
    %p141 = scmp.ne.s32.totalorder %s132, %s133
    %p142 = scmp.eq.s32.totalorder %s17, 0
    %p143 = por %p141, %p142
    %p144 = scmp.ne.s32.totalorder %s132, %s133
    %p145 = scmp.eq.s32.totalorder %s18, 1
    %p146 = por %p144, %p145
    %p148 = scmp.ne.s32.totalorder %s133, %s147
    %p149 = scmp.eq.s32.totalorder %s18, 0
    %p150 = por %p148, %p149
    %s151 = ssub.s32 %s12, %s19
    %p152 = scmp.eq.s32.totalorder %s151, 0
    %s154 = sadd.s32 %s153, 1
    %s155 = scalar_select %p152, %s153, %s154
    %p158 = pneg %p152
    %p159 = scmp.eq.s32.totalorder %s12, 1
    %p160 = por %p158, %p159
    %p161 = scmp.ne.s32.totalorder %s153, %s156
    %p162 = scmp.eq.s32.totalorder %s12, 0
    %p163 = por %p161, %p162
    %p164 = scmp.ne.s32.totalorder %s153, %s156
    %p165 = scmp.eq.s32.totalorder %s17, 1
    %p166 = por %p164, %p165
    %p167 = scmp.ne.s32.totalorder %s156, %s157
    %p168 = scmp.eq.s32.totalorder %s17, 0
    %p169 = por %p167, %p168
    %p170 = scmp.ne.s32.totalorder %s156, %s157
    %p171 = scmp.eq.s32.totalorder %s18, 1
    %p172 = por %p170, %p171
    %p174 = scmp.ne.s32.totalorder %s157, %s173
    %p175 = scmp.eq.s32.totalorder %s18, 0
    %p176 = por %p174, %p175
    %p177 = scmp.le.s32.totalorder 1, %s12
    %p178 = scmp.lt.s32.totalorder %s12, 3
    %p179 = pnand %p177, %p178
    %p180 = pneg %p179
    // Predicated region
    $region9: #{tpu_custom_call.1} parent=5 // pred_check
      _
    $region10: #{tpu_custom_call.1} parent=5 // pred_check_branch
      %182 = sbr.rel (%p179) target = $region12
    $region11: #{tpu_custom_call.1} parent=5 // pred_region
      %s183 = ssub.s32 %s12, 1
      // Predicated region
      $region13: #{tpu_custom_call.1} parent=11 // pred_check
        %p184 = pneg %p59
      $region14: #{tpu_custom_call.1} parent=11 // pred_check_branch
        %186 = sbr.rel (%p184) target = $region16
      $region15: #{tpu_custom_call.1} parent=11 // pred_region
        _
      $region16: #{tpu_custom_call.1} parent=11 // pred_fallthru
        _
      // Predicated region
      $region17: #{tpu_custom_call.1} parent=11 // pred_check
        %p187 = pneg %p80
      $region18: #{tpu_custom_call.1} parent=11 // pred_check_branch
        %189 = sbr.rel (%p187) target = $region20
      $region19: #{tpu_custom_call.1} parent=11 // pred_region
        _
      $region20: #{tpu_custom_call.1} parent=11 // pred_fallthru
        _
      // Predicated region
      $region21: #{tpu_custom_call.1} parent=11 // pred_check
        %p190 = pneg %p101
      $region22: #{tpu_custom_call.1} parent=11 // pred_check_branch
        %192 = sbr.rel (%p190) target = $region24
      $region23: #{tpu_custom_call.1} parent=11 // pred_region
        _
      $region24: #{tpu_custom_call.1} parent=11 // pred_fallthru
        _
      // Predicated region
      $region25: #{tpu_custom_call.1} parent=11 // pred_check
        %p193 = pneg %p122
      $region26: #{tpu_custom_call.1} parent=11 // pred_check_branch
        %195 = sbr.rel (%p193) target = $region28
      $region27: #{tpu_custom_call.1} parent=11 // pred_region
        _
      $region28: #{tpu_custom_call.1} parent=11 // pred_fallthru
        _
      // Predicated region
      $region29: #{tpu_custom_call.1} parent=11 // pred_check
        %p196 = pneg %p143
      $region30: #{tpu_custom_call.1} parent=11 // pred_check_branch
        %198 = sbr.rel (%p196) target = $region32
      $region31: #{tpu_custom_call.1} parent=11 // pred_region
        _
      $region32: #{tpu_custom_call.1} parent=11 // pred_fallthru
        _
    $region12: #{tpu_custom_call.1} parent=5 // pred_fallthru
      _
    %p199 = scmp.lt.s32.totalorder %s12, 2
    // Predicated region
    $region33: #{tpu_custom_call.1} parent=5 // pred_check
      %p200 = pneg %p199
    $region34: #{tpu_custom_call.1} parent=5 // pred_check_branch
      %202 = sbr.rel (%p200) target = $region36
    $region35: #{tpu_custom_call.1} parent=5 // pred_region
      // Predicated region
      $region37: #{tpu_custom_call.1} parent=35 // pred_check
        %p203 = pneg %p32
      $region38: #{tpu_custom_call.1} parent=35 // pred_check_branch
        %205 = sbr.rel (%p203) target = $region40
      $region39: #{tpu_custom_call.1} parent=35 // pred_region
        %s206 = smul.u32 65, %s12
        %p207 = scmp.lt.s32.totalorder %s206, 129
        %s208 = scalar_select %p207, %s206, 129
        %s209 = smul.addr %s208, 8
        %s210 = scalar_lea.vmem %s0, %s209
        %s211 = smul.u32 65, %s12
      $region40: #{tpu_custom_call.1} parent=35 // pred_fallthru
        _
    $region36: #{tpu_custom_call.1} parent=5 // pred_fallthru
      _
    %p212 = scmp.le.s32.totalorder 1, %s12
    %p213 = scmp.lt.s32.totalorder %s12, 3
    %p214 = pnand %p212, %p213
    %p215 = pneg %p214
    // Predicated region
    $region41: #{tpu_custom_call.1} parent=5 // pred_check
      _
    $region42: #{tpu_custom_call.1} parent=5 // pred_check_branch
      %217 = sbr.rel (%p214) target = $region44
    $region43: #{tpu_custom_call.1} parent=5 // pred_region
      %s218 = ssub.s32 %s12, 1
      %s219 = smul.u32 65, %s17
      %p220 = scmp.lt.s32.totalorder %s219, 129
      %s221 = scalar_select %p220, %s219, 129
      %s222 = smul.addr %s221, 8
      %s223 = scalar_lea.vmem %s0, %s222
      %p224 = pneg %p38
      %p225 = pneg %p35
      %p226 = pneg %p59
      %p227 = pneg %p56
      %p228 = pneg %p80
      %p229 = pneg %p77
      %p230 = pneg %p101
      %p231 = pneg %p98
      %p232 = pneg %p122
      %p233 = pneg %p119
      %p234 = pneg %p143
      %p235 = pneg %p140
      %p236 = pneg %p169
      %p237 = pneg %p166
      %s238 = smul.u32 65, %s17
      %p239 = scmp.lt.s32.totalorder %s238, 129
      %s240 = scalar_select %p239, %s238, 129
      %s241 = smul.addr %s240, 8
      %s242 = scalar_lea.vmem %s6, %s241
      %s243 = smul.u32 65, %s17
      %p244 = scmp.lt.s32.totalorder %s243, 129
      %s245 = scalar_select %p244, %s243, 129
      %s246 = smul.addr %s245, 8
      %s247 = scalar_lea.vmem %s0, %s246
      %s248 = smul.u32 65, %s17
      %s249 = smul.u32 65, %s17
      %p250 = scmp.lt.s32.totalorder %s249, 129
      %s251 = scalar_select %p250, %s249, 129
      %s252 = smul.addr %s251, 8
      %s253 = scalar_lea.vmem %s6, %s252
      %s254 = smul.u32 65, %s17
      %v256 = vld [vmem:[%s247] sm:$0xff]
      %v257 = vld [vmem:[%s247 + $0x8] sm:$0xff]
      %v258 = vld [vmem:[%s247 + $0x10] sm:$0xff]
      %v259 = vld [vmem:[%s247 + $0x18] sm:$0xff]
      %v260 = vld [vmem:[%s247 + $0x20] sm:$0xff]
      %v261 = vld [vmem:[%s247 + $0x28] sm:$0xff]
      %v262 = vld [vmem:[%s247 + $0x30] sm:$0xff]
      %v263 = vld [vmem:[%s247 + $0x38] sm:$0xff]
      %v264 = vld [vmem:[%s247 + $0x40] sm:$0xff]
      %v265 = vld [vmem:[%s247 + $0x48] sm:$0xff]
      %v266 = vld [vmem:[%s247 + $0x50] sm:$0xff]
      %v267 = vld [vmem:[%s247 + $0x58] sm:$0xff]
      %v268 = vld [vmem:[%s247 + $0x60] sm:$0xff]
      %v269 = vld [vmem:[%s247 + $0x68] sm:$0xff]
      %v270 = vld [vmem:[%s247 + $0x70] sm:$0xff]
      %v271 = vld [vmem:[%s247 + $0x78] sm:$0xff]
      %v272 = vld [vmem:[%s247 + $0x80] sm:$0xff]
      %v273 = vld [vmem:[%s247 + $0x88] sm:$0xff]
      %v274 = vld [vmem:[%s247 + $0x90] sm:$0xff]
      %v275 = vld [vmem:[%s247 + $0x98] sm:$0xff]
      %v276 = vld [vmem:[%s247 + $0xa0] sm:$0xff]
      %v277 = vld [vmem:[%s247 + $0xa8] sm:$0xff]
      %v278 = vld [vmem:[%s247 + $0xb0] sm:$0xff]
      %v279 = vld [vmem:[%s247 + $0xb8] sm:$0xff]
      %v280 = vld [vmem:[%s247 + $0xc0] sm:$0xff]
      %v281 = vld [vmem:[%s247 + $0xc8] sm:$0xff]
      %v282 = vld [vmem:[%s247 + $0xd0] sm:$0xff]
      %v283 = vld [vmem:[%s247 + $0xd8] sm:$0xff]
      %v284 = vld [vmem:[%s247 + $0xe0] sm:$0xff]
      %v285 = vld [vmem:[%s247 + $0xe8] sm:$0xff]
      %v286 = vld [vmem:[%s247 + $0xf0] sm:$0xff]
      %v287 = vld [vmem:[%s247 + $0xf8] sm:$0xff]
      %v288 = vld [vmem:[%s247 + $0x100] sm:$0xff]
      %v289 = vld [vmem:[%s247 + $0x108] sm:$0xff]
      %v290 = vld [vmem:[%s247 + $0x110] sm:$0xff]
      %v291 = vld [vmem:[%s247 + $0x118] sm:$0xff]
      %v292 = vld [vmem:[%s247 + $0x120] sm:$0xff]
      %v293 = vld [vmem:[%s247 + $0x128] sm:$0xff]
      %v294 = vld [vmem:[%s247 + $0x130] sm:$0xff]
      %v295 = vld [vmem:[%s247 + $0x138] sm:$0xff]
      %v296 = vld [vmem:[%s247 + $0x140] sm:$0xff]
      %v297 = vld [vmem:[%s247 + $0x148] sm:$0xff]
      %v298 = vld [vmem:[%s247 + $0x150] sm:$0xff]
      %v299 = vld [vmem:[%s247 + $0x158] sm:$0xff]
      %v300 = vld [vmem:[%s247 + $0x160] sm:$0xff]
      %v301 = vld [vmem:[%s247 + $0x168] sm:$0xff]
      %v302 = vld [vmem:[%s247 + $0x170] sm:$0xff]
      %v303 = vld [vmem:[%s247 + $0x178] sm:$0xff]
      %v304 = vld [vmem:[%s247 + $0x180] sm:$0xff]
      %v305 = vld [vmem:[%s247 + $0x188] sm:$0xff]
      %v306 = vld [vmem:[%s247 + $0x190] sm:$0xff]
      %v307 = vld [vmem:[%s247 + $0x198] sm:$0xff]
      %v308 = vld [vmem:[%s247 + $0x1a0] sm:$0xff]
      %v309 = vld [vmem:[%s247 + $0x1a8] sm:$0xff]
      %v310 = vld [vmem:[%s247 + $0x1b0] sm:$0xff]
      %v311 = vld [vmem:[%s247 + $0x1b8] sm:$0xff]
      %v312 = vld [vmem:[%s247 + $0x1c0] sm:$0xff]
      %v313 = vld [vmem:[%s247 + $0x1c8] sm:$0xff]
      %v314 = vld [vmem:[%s247 + $0x1d0] sm:$0xff]
      %v315 = vld [vmem:[%s247 + $0x1d8] sm:$0xff]
      %v316 = vld [vmem:[%s247 + $0x1e0] sm:$0xff]
      %v317 = vld [vmem:[%s247 + $0x1e8] sm:$0xff]
      %v318 = vld [vmem:[%s247 + $0x1f0] sm:$0xff]
      %v319 = vld [vmem:[%s247 + $0x1f8] sm:$0xff]
      %v320 = vld [vmem:[%s247 + $0x200] sm:$0xff]
      %v321 = vpack.c.bf16 %v257, %v256
      %v322 = vpack.c.bf16 %v259, %v258
      %v323 = vpack.c.bf16 %v261, %v260
      %v324 = vpack.c.bf16 %v263, %v262
      %v325 = vpack.c.bf16 %v265, %v264
      %v326 = vpack.c.bf16 %v267, %v266
      %v327 = vpack.c.bf16 %v269, %v268
      %v328 = vpack.c.bf16 %v271, %v270
      %v329 = vpack.c.bf16 %v273, %v272
      %v330 = vpack.c.bf16 %v275, %v274
      %v331 = vpack.c.bf16 %v277, %v276
      %v332 = vpack.c.bf16 %v279, %v278
      %v333 = vpack.c.bf16 %v281, %v280
      %v334 = vpack.c.bf16 %v283, %v282
      %v335 = vpack.c.bf16 %v285, %v284
      %v336 = vpack.c.bf16 %v287, %v286
      %v337 = vpack.c.bf16 %v289, %v288
      %v338 = vpack.c.bf16 %v291, %v290
      %v339 = vpack.c.bf16 %v293, %v292
      %v340 = vpack.c.bf16 %v295, %v294
      %v341 = vpack.c.bf16 %v297, %v296
      %v342 = vpack.c.bf16 %v299, %v298
      %v343 = vpack.c.bf16 %v301, %v300
      %v344 = vpack.c.bf16 %v303, %v302
      %v345 = vpack.c.bf16 %v305, %v304
      %v346 = vpack.c.bf16 %v307, %v306
      %v347 = vpack.c.bf16 %v309, %v308
      %v348 = vpack.c.bf16 %v311, %v310
      %v349 = vpack.c.bf16 %v313, %v312
      %v350 = vpack.c.bf16 %v315, %v314
      %v351 = vpack.c.bf16 %v317, %v316
      %v352 = vpack.c.bf16 %v319, %v318
      %v353 = vpack.c.bf16 %v320, %v320
      %v354 = vld [vmem:[%s1] sm:$0xf]
      %v355 = vld [vmem:[%s1 + $0x4] sm:$0xf]
      %v356 = vld [vmem:[%s1 + $0x8] sm:$0xf]
      %v357 = vld [vmem:[%s1 + $0xc] sm:$0xf]
      %v358 = vld [vmem:[%s1 + $0x10] sm:$0xf]
      %v359 = vld [vmem:[%s1 + $0x14] sm:$0xf]
      %v360 = vld [vmem:[%s1 + $0x18] sm:$0xf]
      %v361 = vld [vmem:[%s1 + $0x1c] sm:$0xf]
      %v362 = vld [vmem:[%s1 + $0x20] sm:$0xf]
      %v363 = vld [vmem:[%s1 + $0x24] sm:$0xf]
      %v364 = vld [vmem:[%s1 + $0x28] sm:$0xf]
      %v365 = vld [vmem:[%s1 + $0x2c] sm:$0x1]
      %v366 = vld [vmem:[%s2] sm:$0x1]
      %v368 = vlaneseq
      %v369 = vshrl.u32 %v368, 7
      %v370 = vsub.s32 0, %v369
      %v371 = vrot.slane %v366, %v370
      %v385 = vunpack.c.l.b16 %v354
      %v386 = vunpack.c.l.b16 %v355
      %v387 = vunpack.c.l.b16 %v356
      %v388 = vunpack.c.l.b16 %v357
      %v389 = vunpack.c.l.b16 %v358
      %v390 = vunpack.c.l.b16 %v359
      %v391 = vunpack.c.l.b16 %v360
      %v392 = vunpack.c.l.b16 %v361
      %v393 = vunpack.c.l.b16 %v362
      %v394 = vunpack.c.l.b16 %v363
      %v395 = vunpack.c.l.b16 %v364
      %v396 = vunpack.c.l.b16 %v365
      %v397 = vpack.c.b16 %v386, %v385
      %v398 = vpack.c.b16 %v388, %v387
      %v399 = vpack.c.b16 %v390, %v389
      %v400 = vpack.c.b16 %v392, %v391
      %v401 = vpack.c.b16 %v394, %v393
      %v402 = vpack.c.b16 %v396, %v395
      %vm408 = vcmask 728064
      %v410 = vsel %vm408, %v321, 0
      %v413 = vsel %vm408, %v322, 0
      %v416 = vsel %vm408, %v323, 0
      %v419 = vsel %vm408, %v324, 0
      %v422 = vsel %vm408, %v325, 0
      %v425 = vsel %vm408, %v326, 0
      %v428 = vsel %vm408, %v327, 0
      %v431 = vsel %vm408, %v328, 0
      %v434 = vsel %vm408, %v329, 0
      %v437 = vsel %vm408, %v330, 0
      %v440 = vsel %vm408, %v331, 0
      %v443 = vsel %vm408, %v332, 0
      %v446 = vsel %vm408, %v333, 0
      %v449 = vsel %vm408, %v334, 0
      %v452 = vsel %vm408, %v335, 0
      %v455 = vsel %vm408, %v336, 0
      %v458 = vsel %vm408, %v337, 0
      %v461 = vsel %vm408, %v338, 0
      %v464 = vsel %vm408, %v339, 0
      %v467 = vsel %vm408, %v340, 0
      %v470 = vsel %vm408, %v341, 0
      %v473 = vsel %vm408, %v342, 0
      %v476 = vsel %vm408, %v343, 0
      %v479 = vsel %vm408, %v344, 0
      %v482 = vsel %vm408, %v345, 0
      %v485 = vsel %vm408, %v346, 0
      %v488 = vsel %vm408, %v347, 0
      %v491 = vsel %vm408, %v348, 0
      %v494 = vsel %vm408, %v349, 0
      %v497 = vsel %vm408, %v350, 0
      %v500 = vsel %vm408, %v351, 0
      %v503 = vsel %vm408, %v352, 0
      %v506 = vsel %vm408, %v353, 0
      %vm508 = vcmask 1043456
      %vm509 = vcmask 1044480
      %v510 = vsel %vm508, 4294967295, 65535
      %v511 = vsel %vm509, %v510, 0
      %v513 = vand.u32 %v402, %v511
      %515 = vmatprep.subr.bf16.mxu0 0
      %516 = vmatpush1.bf16.msra.mxu0 0
      %517 = vmatprep.subr.bf16.mxu0 0
      %518 = vmatpush1.bf16.msra.mxu0 0
      %519 = vmatprep.subr.bf16.mxu0 0
      %520 = vmatpush1.bf16.msra.mxu0 %v513
      %521 = vmatprep.subr.bf16.mxu0 0
      %522 = vmatpush1.bf16.msra.mxu0 %v401
      %523 = vmatprep.subr.bf16.mxu0 0
      %524 = vmatpush1.bf16.msra.mxu0 %v400
      %525 = vmatprep.subr.bf16.mxu0 0
      %526 = vmatpush1.bf16.msra.mxu0 %v399
      %527 = vmatprep.subr.bf16.mxu0 0
      %528 = vmatpush1.bf16.msra.mxu0 %v398
      %529 = vmatprep.subr.bf16.mxu0 0
      %530 = vmatpush1.bf16.msra.mxu0 %v397
      %531 = vmatprep.subr.bf16.mxu0 0
      %532 = vmatpush2.bf16.msra.mxu0 0
      %533 = vmatprep.subr.bf16.mxu0 0
      %534 = vmatpush2.bf16.msra.mxu0 0
      %535 = vmatprep.subr.bf16.mxu0 0
      %536 = vmatpush2.bf16.msra.mxu0 0
      %537 = vmatprep.subr.bf16.mxu0 0
      %538 = vmatpush2.bf16.msra.mxu0 0
      %539 = vmatprep.subr.bf16.mxu0 0
      %540 = vmatpush2.bf16.msra.mxu0 0
      %541 = vmatprep.subr.bf16.mxu0 0
      %542 = vmatpush2.bf16.msra.mxu0 0
      %543 = vmatprep.subr.bf16.mxu0 0
      %544 = vmatpush2.bf16.msra.mxu0 0
      %545 = vmatprep.subr.bf16.mxu0 0
      %546 = vmatpush2.bf16.msra.mxu0 0
      %547 = vmatprep.mubr.bf16.mxu0 0
      %548 = vmatmul.mubr.bf16.gmra.mxu0 %v410
      %v549 = vpop.f32.mrf.mxu0
      %v550 = vadd.f32 %v371, %v549
      %v551 = vpop.f32.mrf.mxu0
      %v552 = vpop.f32.mrf.mxu0
      %v553 = vadd.f32 %v371, %v552
      %v554 = vpop.f32.mrf.mxu0
      %555 = vmatprep.mubr.bf16.mxu0 0
      %556 = vmatmul.mubr.bf16.gmra.mxu0 %v413
      %v557 = vpop.f32.mrf.mxu0
      %v558 = vadd.f32 %v371, %v557
      %v559 = vpop.f32.mrf.mxu0
      %v560 = vpop.f32.mrf.mxu0
      %v561 = vadd.f32 %v371, %v560
      %v562 = vpop.f32.mrf.mxu0
      %563 = vmatprep.mubr.bf16.mxu0 0
      %564 = vmatmul.mubr.bf16.gmra.mxu0 %v416
      %v565 = vpop.f32.mrf.mxu0
      %v566 = vadd.f32 %v371, %v565
      %v567 = vpop.f32.mrf.mxu0
      %v568 = vpop.f32.mrf.mxu0
      %v569 = vadd.f32 %v371, %v568
      %v570 = vpop.f32.mrf.mxu0
      %571 = vmatprep.mubr.bf16.mxu0 0
      %572 = vmatmul.mubr.bf16.gmra.mxu0 %v419
      %v573 = vpop.f32.mrf.mxu0
      %v574 = vadd.f32 %v371, %v573
      %v575 = vpop.f32.mrf.mxu0
      %v576 = vpop.f32.mrf.mxu0
      %v577 = vadd.f32 %v371, %v576
      %v578 = vpop.f32.mrf.mxu0
      %579 = vmatprep.mubr.bf16.mxu0 0
      %580 = vmatmul.mubr.bf16.gmra.mxu0 %v422
      %v581 = vpop.f32.mrf.mxu0
      %v582 = vadd.f32 %v371, %v581
      %v583 = vpop.f32.mrf.mxu0
      %v584 = vpop.f32.mrf.mxu0
      %v585 = vadd.f32 %v371, %v584
      %v586 = vpop.f32.mrf.mxu0
      %587 = vmatprep.mubr.bf16.mxu0 0
      %588 = vmatmul.mubr.bf16.gmra.mxu0 %v425
      %v589 = vpop.f32.mrf.mxu0
      %v590 = vadd.f32 %v371, %v589
      %v591 = vpop.f32.mrf.mxu0
      %v592 = vpop.f32.mrf.mxu0
      %v593 = vadd.f32 %v371, %v592
      %v594 = vpop.f32.mrf.mxu0
      %595 = vmatprep.mubr.bf16.mxu0 0
      %596 = vmatmul.mubr.bf16.gmra.mxu0 %v428
      %v597 = vpop.f32.mrf.mxu0
      %v598 = vadd.f32 %v371, %v597
      %v599 = vpop.f32.mrf.mxu0
      %v600 = vpop.f32.mrf.mxu0
      %v601 = vadd.f32 %v371, %v600
      %v602 = vpop.f32.mrf.mxu0
      %603 = vmatprep.mubr.bf16.mxu0 0
      %604 = vmatmul.mubr.bf16.gmra.mxu0 %v431
      %v605 = vpop.f32.mrf.mxu0
      %v606 = vadd.f32 %v371, %v605
      %v607 = vpop.f32.mrf.mxu0
      %v608 = vpop.f32.mrf.mxu0
      %v609 = vadd.f32 %v371, %v608
      %v610 = vpop.f32.mrf.mxu0
      %611 = vmatprep.mubr.bf16.mxu0 0
      %612 = vmatmul.mubr.bf16.gmra.mxu0 %v434
      %v613 = vpop.f32.mrf.mxu0
      %v614 = vadd.f32 %v371, %v613
      %v615 = vpop.f32.mrf.mxu0
      %v616 = vpop.f32.mrf.mxu0
      %v617 = vadd.f32 %v371, %v616
      %v618 = vpop.f32.mrf.mxu0
      %619 = vmatprep.mubr.bf16.mxu0 0
      %620 = vmatmul.mubr.bf16.gmra.mxu0 %v437
      %v621 = vpop.f32.mrf.mxu0
      %v622 = vadd.f32 %v371, %v621
      %v623 = vpop.f32.mrf.mxu0
      %v624 = vpop.f32.mrf.mxu0
      %v625 = vadd.f32 %v371, %v624
      %v626 = vpop.f32.mrf.mxu0
      %627 = vmatprep.mubr.bf16.mxu0 0
      %628 = vmatmul.mubr.bf16.gmra.mxu0 %v440
      %v629 = vpop.f32.mrf.mxu0
      %v630 = vadd.f32 %v371, %v629
      %v631 = vpop.f32.mrf.mxu0
      %v632 = vpop.f32.mrf.mxu0
      %v633 = vadd.f32 %v371, %v632
      %v634 = vpop.f32.mrf.mxu0
      %635 = vmatprep.mubr.bf16.mxu0 0
      %636 = vmatmul.mubr.bf16.gmra.mxu0 %v443
      %v637 = vpop.f32.mrf.mxu0
      %v638 = vadd.f32 %v371, %v637
      %v639 = vpop.f32.mrf.mxu0
      %v640 = vpop.f32.mrf.mxu0
      %v641 = vadd.f32 %v371, %v640
      %v642 = vpop.f32.mrf.mxu0
      %643 = vmatprep.mubr.bf16.mxu0 0
      %644 = vmatmul.mubr.bf16.gmra.mxu0 %v446
      %v645 = vpop.f32.mrf.mxu0
      %v646 = vadd.f32 %v371, %v645
      %v647 = vpop.f32.mrf.mxu0
      %v648 = vpop.f32.mrf.mxu0
      %v649 = vadd.f32 %v371, %v648
      %v650 = vpop.f32.mrf.mxu0
      %651 = vmatprep.mubr.bf16.mxu0 0
      %652 = vmatmul.mubr.bf16.gmra.mxu0 %v449
      %v653 = vpop.f32.mrf.mxu0
      %v654 = vadd.f32 %v371, %v653
      %v655 = vpop.f32.mrf.mxu0
      %v656 = vpop.f32.mrf.mxu0
      %v657 = vadd.f32 %v371, %v656
      %v658 = vpop.f32.mrf.mxu0
      %659 = vmatprep.mubr.bf16.mxu0 0
      %660 = vmatmul.mubr.bf16.gmra.mxu0 %v452
      %v661 = vpop.f32.mrf.mxu0
      %v662 = vadd.f32 %v371, %v661
      %v663 = vpop.f32.mrf.mxu0
      %v664 = vpop.f32.mrf.mxu0
      %v665 = vadd.f32 %v371, %v664
      %v666 = vpop.f32.mrf.mxu0
      %667 = vmatprep.mubr.bf16.mxu0 0
      %668 = vmatmul.mubr.bf16.gmra.mxu0 %v455
      %v669 = vpop.f32.mrf.mxu0
      %v670 = vadd.f32 %v371, %v669
      %v671 = vpop.f32.mrf.mxu0
      %v672 = vpop.f32.mrf.mxu0
      %v673 = vadd.f32 %v371, %v672
      %v674 = vpop.f32.mrf.mxu0
      %675 = vmatprep.mubr.bf16.mxu0 0
      %676 = vmatmul.mubr.bf16.gmra.mxu0 %v458
      %v677 = vpop.f32.mrf.mxu0
      %v678 = vadd.f32 %v371, %v677
      %v679 = vpop.f32.mrf.mxu0
      %v680 = vpop.f32.mrf.mxu0
      %v681 = vadd.f32 %v371, %v680
      %v682 = vpop.f32.mrf.mxu0
      %683 = vmatprep.mubr.bf16.mxu0 0
      %684 = vmatmul.mubr.bf16.gmra.mxu0 %v461
      %v685 = vpop.f32.mrf.mxu0
      %v686 = vadd.f32 %v371, %v685
      %v687 = vpop.f32.mrf.mxu0
      %v688 = vpop.f32.mrf.mxu0
      %v689 = vadd.f32 %v371, %v688
      %v690 = vpop.f32.mrf.mxu0
      %691 = vmatprep.mubr.bf16.mxu0 0
      %692 = vmatmul.mubr.bf16.gmra.mxu0 %v464
      %v693 = vpop.f32.mrf.mxu0
      %v694 = vadd.f32 %v371, %v693
      %v695 = vpop.f32.mrf.mxu0
      %v696 = vpop.f32.mrf.mxu0
      %v697 = vadd.f32 %v371, %v696
      %v698 = vpop.f32.mrf.mxu0
      %699 = vmatprep.mubr.bf16.mxu0 0
      %700 = vmatmul.mubr.bf16.gmra.mxu0 %v467
      %v701 = vpop.f32.mrf.mxu0
      %v702 = vadd.f32 %v371, %v701
      %v703 = vpop.f32.mrf.mxu0
      %v704 = vpop.f32.mrf.mxu0
      %v705 = vadd.f32 %v371, %v704
      %v706 = vpop.f32.mrf.mxu0
      %707 = vmatprep.mubr.bf16.mxu0 0
      %708 = vmatmul.mubr.bf16.gmra.mxu0 %v470
      %v709 = vpop.f32.mrf.mxu0
      %v710 = vadd.f32 %v371, %v709
      %v711 = vpop.f32.mrf.mxu0
      %v712 = vpop.f32.mrf.mxu0
      %v713 = vadd.f32 %v371, %v712
      %v714 = vpop.f32.mrf.mxu0
      %715 = vmatprep.mubr.bf16.mxu0 0
      %716 = vmatmul.mubr.bf16.gmra.mxu0 %v473
      %v717 = vpop.f32.mrf.mxu0
      %v718 = vadd.f32 %v371, %v717
      %v719 = vpop.f32.mrf.mxu0
      %v720 = vpop.f32.mrf.mxu0
      %v721 = vadd.f32 %v371, %v720
      %v722 = vpop.f32.mrf.mxu0
      %723 = vmatprep.mubr.bf16.mxu0 0
      %724 = vmatmul.mubr.bf16.gmra.mxu0 %v476
      %v725 = vpop.f32.mrf.mxu0
      %v726 = vadd.f32 %v371, %v725
      %v727 = vpop.f32.mrf.mxu0
      %v728 = vpop.f32.mrf.mxu0
      %v729 = vadd.f32 %v371, %v728
      %v730 = vpop.f32.mrf.mxu0
      %731 = vmatprep.mubr.bf16.mxu0 0
      %732 = vmatmul.mubr.bf16.gmra.mxu0 %v479
      %v733 = vpop.f32.mrf.mxu0
      %v734 = vadd.f32 %v371, %v733
      %v735 = vpop.f32.mrf.mxu0
      %v736 = vpop.f32.mrf.mxu0
      %v737 = vadd.f32 %v371, %v736
      %v738 = vpop.f32.mrf.mxu0
      %739 = vmatprep.mubr.bf16.mxu0 0
      %740 = vmatmul.mubr.bf16.gmra.mxu0 %v482
      %v741 = vpop.f32.mrf.mxu0
      %v742 = vadd.f32 %v371, %v741
      %v743 = vpop.f32.mrf.mxu0
      %v744 = vpop.f32.mrf.mxu0
      %v745 = vadd.f32 %v371, %v744
      %v746 = vpop.f32.mrf.mxu0
      %747 = vmatprep.mubr.bf16.mxu0 0
      %748 = vmatmul.mubr.bf16.gmra.mxu0 %v485
      %v749 = vpop.f32.mrf.mxu0
      %v750 = vadd.f32 %v371, %v749
      %v751 = vpop.f32.mrf.mxu0
      %v752 = vpop.f32.mrf.mxu0
      %v753 = vadd.f32 %v371, %v752
      %v754 = vpop.f32.mrf.mxu0
      %755 = vmatprep.mubr.bf16.mxu0 0
      %756 = vmatmul.mubr.bf16.gmra.mxu0 %v488
      %v757 = vpop.f32.mrf.mxu0
      %v758 = vadd.f32 %v371, %v757
      %v759 = vpop.f32.mrf.mxu0
      %v760 = vpop.f32.mrf.mxu0
      %v761 = vadd.f32 %v371, %v760
      %v762 = vpop.f32.mrf.mxu0
      %763 = vmatprep.mubr.bf16.mxu0 0
      %764 = vmatmul.mubr.bf16.gmra.mxu0 %v491
      %v765 = vpop.f32.mrf.mxu0
      %v766 = vadd.f32 %v371, %v765
      %v767 = vpop.f32.mrf.mxu0
      %v768 = vpop.f32.mrf.mxu0
      %v769 = vadd.f32 %v371, %v768
      %v770 = vpop.f32.mrf.mxu0
      %771 = vmatprep.mubr.bf16.mxu0 0
      %772 = vmatmul.mubr.bf16.gmra.mxu0 %v494
      %v773 = vpop.f32.mrf.mxu0
      %v774 = vadd.f32 %v371, %v773
      %v775 = vpop.f32.mrf.mxu0
      %v776 = vpop.f32.mrf.mxu0
      %v777 = vadd.f32 %v371, %v776
      %v778 = vpop.f32.mrf.mxu0
      %779 = vmatprep.mubr.bf16.mxu0 0
      %780 = vmatmul.mubr.bf16.gmra.mxu0 %v497
      %v781 = vpop.f32.mrf.mxu0
      %v782 = vadd.f32 %v371, %v781
      %v783 = vpop.f32.mrf.mxu0
      %v784 = vpop.f32.mrf.mxu0
      %v785 = vadd.f32 %v371, %v784
      %v786 = vpop.f32.mrf.mxu0
      %787 = vmatprep.mubr.bf16.mxu0 0
      %788 = vmatmul.mubr.bf16.gmra.mxu0 %v500
      %v789 = vpop.f32.mrf.mxu0
      %v790 = vadd.f32 %v371, %v789
      %v791 = vpop.f32.mrf.mxu0
      %v792 = vpop.f32.mrf.mxu0
      %v793 = vadd.f32 %v371, %v792
      %v794 = vpop.f32.mrf.mxu0
      %795 = vmatprep.mubr.bf16.mxu0 0
      %796 = vmatmul.mubr.bf16.gmra.mxu0 %v503
      %v797 = vpop.f32.mrf.mxu0
      %v798 = vadd.f32 %v371, %v797
      %v799 = vpop.f32.mrf.mxu0
      %v800 = vpop.f32.mrf.mxu0
      %v801 = vadd.f32 %v371, %v800
      %v802 = vpop.f32.mrf.mxu0
      %803 = vmatprep.mubr.bf16.mxu0 0
      %804 = vmatmul.mubr.bf16.gmra.mxu0 %v506
      %v805 = vpop.f32.mrf.mxu0
      %v806 = vadd.f32 %v371, %v805
      %v807 = vpop.f32.mrf.mxu0
      %v808 = vpop.f32.mrf.mxu0
      %v809 = vpop.f32.mrf.mxu0
      %810 = vdwg.mxu0
      %v811 = vpack.c.bf16 %v553, %v550
      %v812 = vpack.c.bf16 %v561, %v558
      %v813 = vpack.c.bf16 %v569, %v566
      %v814 = vpack.c.bf16 %v577, %v574
      %v815 = vpack.c.bf16 %v585, %v582
      %v816 = vpack.c.bf16 %v593, %v590
      %v817 = vpack.c.bf16 %v601, %v598
      %v818 = vpack.c.bf16 %v609, %v606
      %v819 = vpack.c.bf16 %v617, %v614
      %v820 = vpack.c.bf16 %v625, %v622
      %v821 = vpack.c.bf16 %v633, %v630
      %v822 = vpack.c.bf16 %v641, %v638
      %v823 = vpack.c.bf16 %v649, %v646
      %v824 = vpack.c.bf16 %v657, %v654
      %v825 = vpack.c.bf16 %v665, %v662
      %v826 = vpack.c.bf16 %v673, %v670
      %v827 = vpack.c.bf16 %v681, %v678
      %v828 = vpack.c.bf16 %v689, %v686
      %v829 = vpack.c.bf16 %v697, %v694
      %v830 = vpack.c.bf16 %v705, %v702
      %v831 = vpack.c.bf16 %v713, %v710
      %v832 = vpack.c.bf16 %v721, %v718
      %v833 = vpack.c.bf16 %v729, %v726
      %v834 = vpack.c.bf16 %v737, %v734
      %v835 = vpack.c.bf16 %v745, %v742
      %v836 = vpack.c.bf16 %v753, %v750
      %v837 = vpack.c.bf16 %v761, %v758
      %v838 = vpack.c.bf16 %v769, %v766
      %v839 = vpack.c.bf16 %v777, %v774
      %v840 = vpack.c.bf16 %v785, %v782
      %v841 = vpack.c.bf16 %v793, %v790
      %v842 = vpack.c.bf16 %v801, %v798
      %v843 = vpack.c.bf16 %v806, %v806
      %v844 = vmax.bf16 %v811, 0
      %v845 = vmax.bf16 %v812, 0
      %v846 = vmax.bf16 %v813, 0
      %v847 = vmax.bf16 %v814, 0
      %v848 = vmax.bf16 %v815, 0
      %v849 = vmax.bf16 %v816, 0
      %v850 = vmax.bf16 %v817, 0
      %v851 = vmax.bf16 %v818, 0
      %v852 = vmax.bf16 %v819, 0
      %v853 = vmax.bf16 %v820, 0
      %v854 = vmax.bf16 %v821, 0
      %v855 = vmax.bf16 %v822, 0
      %v856 = vmax.bf16 %v823, 0
      %v857 = vmax.bf16 %v824, 0
      %v858 = vmax.bf16 %v825, 0
      %v859 = vmax.bf16 %v826, 0
      %v860 = vmax.bf16 %v827, 0
      %v861 = vmax.bf16 %v828, 0
      %v862 = vmax.bf16 %v829, 0
      %v863 = vmax.bf16 %v830, 0
      %v864 = vmax.bf16 %v831, 0
      %v865 = vmax.bf16 %v832, 0
      %v866 = vmax.bf16 %v833, 0
      %v867 = vmax.bf16 %v834, 0
      %v868 = vmax.bf16 %v835, 0
      %v869 = vmax.bf16 %v836, 0
      %v870 = vmax.bf16 %v837, 0
      %v871 = vmax.bf16 %v838, 0
      %v872 = vmax.bf16 %v839, 0
      %v873 = vmax.bf16 %v840, 0
      %v874 = vmax.bf16 %v841, 0
      %v875 = vmax.bf16 %v842, 0
      %v876 = vmax.bf16 %v843, 0
      %v877 = vld [vmem:[%s3] sm:$0xf]
      %v878 = vld [vmem:[%s3 + $0x4] sm:$0xf]
      %v879 = vld [vmem:[%s3 + $0x8] sm:$0xf]
      %v880 = vld [vmem:[%s3 + $0xc] sm:$0xf]
      %v881 = vld [vmem:[%s3 + $0x10] sm:$0xf]
      %v882 = vld [vmem:[%s3 + $0x14] sm:$0xf]
      %v883 = vld [vmem:[%s3 + $0x18] sm:$0xf]
      %v884 = vld [vmem:[%s3 + $0x1c] sm:$0xf]
      %v885 = vld [vmem:[%s3 + $0x20] sm:$0xf]
      %v886 = vld [vmem:[%s3 + $0x24] sm:$0xf]
      %v887 = vld [vmem:[%s3 + $0x28] sm:$0xf]
      %v888 = vld [vmem:[%s3 + $0x2c] sm:$0xf]
      %v889 = vld [vmem:[%s3 + $0x30] sm:$0xf]
      %v890 = vld [vmem:[%s3 + $0x34] sm:$0xf]
      %v891 = vld [vmem:[%s3 + $0x38] sm:$0xf]
      %v892 = vld [vmem:[%s3 + $0x3c] sm:$0xf]
      %v909 = vunpack.c.l.b16 %v877
      %v910 = vunpack.c.l.b16 %v878
      %v911 = vunpack.c.l.b16 %v879
      %v912 = vunpack.c.l.b16 %v880
      %v913 = vunpack.c.l.b16 %v881
      %v914 = vunpack.c.l.b16 %v882
      %v915 = vunpack.c.l.b16 %v883
      %v916 = vunpack.c.l.b16 %v884
      %v917 = vunpack.c.l.b16 %v885
      %v918 = vunpack.c.l.b16 %v886
      %v919 = vunpack.c.l.b16 %v887
      %v920 = vunpack.c.l.b16 %v888
      %v921 = vunpack.c.l.b16 %v889
      %v922 = vunpack.c.l.b16 %v890
      %v923 = vunpack.c.l.b16 %v891
      %v924 = vunpack.c.l.b16 %v892
      %v925 = vpack.c.b16 %v910, %v909
      %v926 = vpack.c.b16 %v912, %v911
      %v927 = vpack.c.b16 %v914, %v913
      %v928 = vpack.c.b16 %v916, %v915
      %v929 = vpack.c.b16 %v918, %v917
      %v930 = vpack.c.b16 %v920, %v919
      %v931 = vpack.c.b16 %v922, %v921
      %v932 = vpack.c.b16 %v924, %v923
      %941 = vmatprep.subr.bf16.mxu0 0
      %942 = vmatpush1.bf16.msra.mxu0 %v932
      %943 = vmatprep.subr.bf16.mxu0 0
      %944 = vmatpush1.bf16.msra.mxu0 %v931
      %945 = vmatprep.subr.bf16.mxu0 0
      %946 = vmatpush1.bf16.msra.mxu0 %v930
      %947 = vmatprep.subr.bf16.mxu0 0
      %948 = vmatpush1.bf16.msra.mxu0 %v929
      %949 = vmatprep.subr.bf16.mxu0 0
      %950 = vmatpush1.bf16.msra.mxu0 %v928
      %951 = vmatprep.subr.bf16.mxu0 0
      %952 = vmatpush1.bf16.msra.mxu0 %v927
      %953 = vmatprep.subr.bf16.mxu0 0
      %954 = vmatpush1.bf16.msra.mxu0 %v926
      %955 = vmatprep.subr.bf16.mxu0 0
      %956 = vmatpush1.bf16.msra.mxu0 %v925
      %957 = vmatprep.subr.bf16.mxu0 0
      %958 = vmatpush2.bf16.msra.mxu0 0
      %959 = vmatprep.subr.bf16.mxu0 0
      %960 = vmatpush2.bf16.msra.mxu0 0
      %961 = vmatprep.subr.bf16.mxu0 0
      %962 = vmatpush2.bf16.msra.mxu0 0
      %963 = vmatprep.subr.bf16.mxu0 0
      %964 = vmatpush2.bf16.msra.mxu0 0
      %965 = vmatprep.subr.bf16.mxu0 0
      %966 = vmatpush2.bf16.msra.mxu0 0
      %967 = vmatprep.subr.bf16.mxu0 0
      %968 = vmatpush2.bf16.msra.mxu0 0
      %969 = vmatprep.subr.bf16.mxu0 0
      %970 = vmatpush2.bf16.msra.mxu0 0
      %971 = vmatprep.subr.bf16.mxu0 0
      %972 = vmatpush2.bf16.msra.mxu0 0
      %973 = vmatprep.mubr.bf16.mxu0 0
      %974 = vmatmul.mubr.bf16.gmra.mxu0 %v844
      %v975 = vpop.f32.mrf.mxu0
      %v976 = vadd.f32 0.0, %v975
      %v977 = vpop.f32.mrf.mxu0
      %v978 = vpop.f32.mrf.mxu0
      %v979 = vadd.f32 0.0, %v978
      %v980 = vpop.f32.mrf.mxu0
      %981 = vmatprep.mubr.bf16.mxu0 0
      %982 = vmatmul.mubr.bf16.gmra.mxu0 %v845
      %v983 = vpop.f32.mrf.mxu0
      %v984 = vadd.f32 0.0, %v983
      %v985 = vpop.f32.mrf.mxu0
      %v986 = vpop.f32.mrf.mxu0
      %v987 = vadd.f32 0.0, %v986
      %v988 = vpop.f32.mrf.mxu0
      %989 = vmatprep.mubr.bf16.mxu0 0
      %990 = vmatmul.mubr.bf16.gmra.mxu0 %v846
      %v991 = vpop.f32.mrf.mxu0
      %v992 = vadd.f32 0.0, %v991
      %v993 = vpop.f32.mrf.mxu0
      %v994 = vpop.f32.mrf.mxu0
      %v995 = vadd.f32 0.0, %v994
      %v996 = vpop.f32.mrf.mxu0
      %997 = vmatprep.mubr.bf16.mxu0 0
      %998 = vmatmul.mubr.bf16.gmra.mxu0 %v847
      %v999 = vpop.f32.mrf.mxu0
      %v1000 = vadd.f32 0.0, %v999
      %v1001 = vpop.f32.mrf.mxu0
      %v1002 = vpop.f32.mrf.mxu0
      %v1003 = vadd.f32 0.0, %v1002
      %v1004 = vpop.f32.mrf.mxu0
      %1005 = vmatprep.mubr.bf16.mxu0 0
      %1006 = vmatmul.mubr.bf16.gmra.mxu0 %v848
      %v1007 = vpop.f32.mrf.mxu0
      %v1008 = vadd.f32 0.0, %v1007
      %v1009 = vpop.f32.mrf.mxu0
      %v1010 = vpop.f32.mrf.mxu0
      %v1011 = vadd.f32 0.0, %v1010
      %v1012 = vpop.f32.mrf.mxu0
      %1013 = vmatprep.mubr.bf16.mxu0 0
      %1014 = vmatmul.mubr.bf16.gmra.mxu0 %v849
      %v1015 = vpop.f32.mrf.mxu0
      %v1016 = vadd.f32 0.0, %v1015
      %v1017 = vpop.f32.mrf.mxu0
      %v1018 = vpop.f32.mrf.mxu0
      %v1019 = vadd.f32 0.0, %v1018
      %v1020 = vpop.f32.mrf.mxu0
      %1021 = vmatprep.mubr.bf16.mxu0 0
      %1022 = vmatmul.mubr.bf16.gmra.mxu0 %v850
      %v1023 = vpop.f32.mrf.mxu0
      %v1024 = vadd.f32 0.0, %v1023
      %v1025 = vpop.f32.mrf.mxu0
      %v1026 = vpop.f32.mrf.mxu0
      %v1027 = vadd.f32 0.0, %v1026
      %v1028 = vpop.f32.mrf.mxu0
      %1029 = vmatprep.mubr.bf16.mxu0 0
      %1030 = vmatmul.mubr.bf16.gmra.mxu0 %v851
      %v1031 = vpop.f32.mrf.mxu0
      %v1032 = vadd.f32 0.0, %v1031
      %v1033 = vpop.f32.mrf.mxu0
      %v1034 = vpop.f32.mrf.mxu0
      %v1035 = vadd.f32 0.0, %v1034
      %v1036 = vpop.f32.mrf.mxu0
      %1037 = vmatprep.mubr.bf16.mxu0 0
      %1038 = vmatmul.mubr.bf16.gmra.mxu0 %v852
      %v1039 = vpop.f32.mrf.mxu0
      %v1040 = vadd.f32 0.0, %v1039
      %v1041 = vpop.f32.mrf.mxu0
      %v1042 = vpop.f32.mrf.mxu0
      %v1043 = vadd.f32 0.0, %v1042
      %v1044 = vpop.f32.mrf.mxu0
      %1045 = vmatprep.mubr.bf16.mxu0 0
      %1046 = vmatmul.mubr.bf16.gmra.mxu0 %v853
      %v1047 = vpop.f32.mrf.mxu0
      %v1048 = vadd.f32 0.0, %v1047
      %v1049 = vpop.f32.mrf.mxu0
      %v1050 = vpop.f32.mrf.mxu0
      %v1051 = vadd.f32 0.0, %v1050
      %v1052 = vpop.f32.mrf.mxu0
      %1053 = vmatprep.mubr.bf16.mxu0 0
      %1054 = vmatmul.mubr.bf16.gmra.mxu0 %v854
      %v1055 = vpop.f32.mrf.mxu0
      %v1056 = vadd.f32 0.0, %v1055
      %v1057 = vpop.f32.mrf.mxu0
      %v1058 = vpop.f32.mrf.mxu0
      %v1059 = vadd.f32 0.0, %v1058
      %v1060 = vpop.f32.mrf.mxu0
      %1061 = vmatprep.mubr.bf16.mxu0 0
      %1062 = vmatmul.mubr.bf16.gmra.mxu0 %v855
      %v1063 = vpop.f32.mrf.mxu0
      %v1064 = vadd.f32 0.0, %v1063
      %v1065 = vpop.f32.mrf.mxu0
      %v1066 = vpop.f32.mrf.mxu0
      %v1067 = vadd.f32 0.0, %v1066
      %v1068 = vpop.f32.mrf.mxu0
      %1069 = vmatprep.mubr.bf16.mxu0 0
      %1070 = vmatmul.mubr.bf16.gmra.mxu0 %v856
      %v1071 = vpop.f32.mrf.mxu0
      %v1072 = vadd.f32 0.0, %v1071
      %v1073 = vpop.f32.mrf.mxu0
      %v1074 = vpop.f32.mrf.mxu0
      %v1075 = vadd.f32 0.0, %v1074
      %v1076 = vpop.f32.mrf.mxu0
      %1077 = vmatprep.mubr.bf16.mxu0 0
      %1078 = vmatmul.mubr.bf16.gmra.mxu0 %v857
      %v1079 = vpop.f32.mrf.mxu0
      %v1080 = vadd.f32 0.0, %v1079
      %v1081 = vpop.f32.mrf.mxu0
      %v1082 = vpop.f32.mrf.mxu0
      %v1083 = vadd.f32 0.0, %v1082
      %v1084 = vpop.f32.mrf.mxu0
      %1085 = vmatprep.mubr.bf16.mxu0 0
      %1086 = vmatmul.mubr.bf16.gmra.mxu0 %v858
      %v1087 = vpop.f32.mrf.mxu0
      %v1088 = vadd.f32 0.0, %v1087
      %v1089 = vpop.f32.mrf.mxu0
      %v1090 = vpop.f32.mrf.mxu0
      %v1091 = vadd.f32 0.0, %v1090
      %v1092 = vpop.f32.mrf.mxu0
      %1093 = vmatprep.mubr.bf16.mxu0 0
      %1094 = vmatmul.mubr.bf16.gmra.mxu0 %v859
      %v1095 = vpop.f32.mrf.mxu0
      %v1096 = vadd.f32 0.0, %v1095
      %v1097 = vpop.f32.mrf.mxu0
      %v1098 = vpop.f32.mrf.mxu0
      %v1099 = vadd.f32 0.0, %v1098
      %v1100 = vpop.f32.mrf.mxu0
      %1101 = vmatprep.mubr.bf16.mxu0 0
      %1102 = vmatmul.mubr.bf16.gmra.mxu0 %v860
      %v1103 = vpop.f32.mrf.mxu0
      %v1104 = vadd.f32 0.0, %v1103
      %v1105 = vpop.f32.mrf.mxu0
      %v1106 = vpop.f32.mrf.mxu0
      %v1107 = vadd.f32 0.0, %v1106
      %v1108 = vpop.f32.mrf.mxu0
      %1109 = vmatprep.mubr.bf16.mxu0 0
      %1110 = vmatmul.mubr.bf16.gmra.mxu0 %v861
      %v1111 = vpop.f32.mrf.mxu0
      %v1112 = vadd.f32 0.0, %v1111
      %v1113 = vpop.f32.mrf.mxu0
      %v1114 = vpop.f32.mrf.mxu0
      %v1115 = vadd.f32 0.0, %v1114
      %v1116 = vpop.f32.mrf.mxu0
      %1117 = vmatprep.mubr.bf16.mxu0 0
      %1118 = vmatmul.mubr.bf16.gmra.mxu0 %v862
      %v1119 = vpop.f32.mrf.mxu0
      %v1120 = vadd.f32 0.0, %v1119
      %v1121 = vpop.f32.mrf.mxu0
      %v1122 = vpop.f32.mrf.mxu0
      %v1123 = vadd.f32 0.0, %v1122
      %v1124 = vpop.f32.mrf.mxu0
      %1125 = vmatprep.mubr.bf16.mxu0 0
      %1126 = vmatmul.mubr.bf16.gmra.mxu0 %v863
      %v1127 = vpop.f32.mrf.mxu0
      %v1128 = vadd.f32 0.0, %v1127
      %v1129 = vpop.f32.mrf.mxu0
      %v1130 = vpop.f32.mrf.mxu0
      %v1131 = vadd.f32 0.0, %v1130
      %v1132 = vpop.f32.mrf.mxu0
      %1133 = vmatprep.mubr.bf16.mxu0 0
      %1134 = vmatmul.mubr.bf16.gmra.mxu0 %v864
      %v1135 = vpop.f32.mrf.mxu0
      %v1136 = vadd.f32 0.0, %v1135
      %v1137 = vpop.f32.mrf.mxu0
      %v1138 = vpop.f32.mrf.mxu0
      %v1139 = vadd.f32 0.0, %v1138
      %v1140 = vpop.f32.mrf.mxu0
      %1141 = vmatprep.mubr.bf16.mxu0 0
      %1142 = vmatmul.mubr.bf16.gmra.mxu0 %v865
      %v1143 = vpop.f32.mrf.mxu0
      %v1144 = vadd.f32 0.0, %v1143
      %v1145 = vpop.f32.mrf.mxu0
      %v1146 = vpop.f32.mrf.mxu0
      %v1147 = vadd.f32 0.0, %v1146
      %v1148 = vpop.f32.mrf.mxu0
      %1149 = vmatprep.mubr.bf16.mxu0 0
      %1150 = vmatmul.mubr.bf16.gmra.mxu0 %v866
      %v1151 = vpop.f32.mrf.mxu0
      %v1152 = vadd.f32 0.0, %v1151
      %v1153 = vpop.f32.mrf.mxu0
      %v1154 = vpop.f32.mrf.mxu0
      %v1155 = vadd.f32 0.0, %v1154
      %v1156 = vpop.f32.mrf.mxu0
      %1157 = vmatprep.mubr.bf16.mxu0 0
      %1158 = vmatmul.mubr.bf16.gmra.mxu0 %v867
      %v1159 = vpop.f32.mrf.mxu0
      %v1160 = vadd.f32 0.0, %v1159
      %v1161 = vpop.f32.mrf.mxu0
      %v1162 = vpop.f32.mrf.mxu0
      %v1163 = vadd.f32 0.0, %v1162
      %v1164 = vpop.f32.mrf.mxu0
      %1165 = vmatprep.mubr.bf16.mxu0 0
      %1166 = vmatmul.mubr.bf16.gmra.mxu0 %v868
      %v1167 = vpop.f32.mrf.mxu0
      %v1168 = vadd.f32 0.0, %v1167
      %v1169 = vpop.f32.mrf.mxu0
      %v1170 = vpop.f32.mrf.mxu0
      %v1171 = vadd.f32 0.0, %v1170
      %v1172 = vpop.f32.mrf.mxu0
      %1173 = vmatprep.mubr.bf16.mxu0 0
      %1174 = vmatmul.mubr.bf16.gmra.mxu0 %v869
      %v1175 = vpop.f32.mrf.mxu0
      %v1176 = vadd.f32 0.0, %v1175
      %v1177 = vpop.f32.mrf.mxu0
      %v1178 = vpop.f32.mrf.mxu0
      %v1179 = vadd.f32 0.0, %v1178
      %v1180 = vpop.f32.mrf.mxu0
      %1181 = vmatprep.mubr.bf16.mxu0 0
      %1182 = vmatmul.mubr.bf16.gmra.mxu0 %v870
      %v1183 = vpop.f32.mrf.mxu0
      %v1184 = vadd.f32 0.0, %v1183
      %v1185 = vpop.f32.mrf.mxu0
      %v1186 = vpop.f32.mrf.mxu0
      %v1187 = vadd.f32 0.0, %v1186
      %v1188 = vpop.f32.mrf.mxu0
      %1189 = vmatprep.mubr.bf16.mxu0 0
      %1190 = vmatmul.mubr.bf16.gmra.mxu0 %v871
      %v1191 = vpop.f32.mrf.mxu0
      %v1192 = vadd.f32 0.0, %v1191
      %v1193 = vpop.f32.mrf.mxu0
      %v1194 = vpop.f32.mrf.mxu0
      %v1195 = vadd.f32 0.0, %v1194
      %v1196 = vpop.f32.mrf.mxu0
      %1197 = vmatprep.mubr.bf16.mxu0 0
      %1198 = vmatmul.mubr.bf16.gmra.mxu0 %v872
      %v1199 = vpop.f32.mrf.mxu0
      %v1200 = vadd.f32 0.0, %v1199
      %v1201 = vpop.f32.mrf.mxu0
      %v1202 = vpop.f32.mrf.mxu0
      %v1203 = vadd.f32 0.0, %v1202
      %v1204 = vpop.f32.mrf.mxu0
      %1205 = vmatprep.mubr.bf16.mxu0 0
      %1206 = vmatmul.mubr.bf16.gmra.mxu0 %v873
      %v1207 = vpop.f32.mrf.mxu0
      %v1208 = vadd.f32 0.0, %v1207
      %v1209 = vpop.f32.mrf.mxu0
      %v1210 = vpop.f32.mrf.mxu0
      %v1211 = vadd.f32 0.0, %v1210
      %v1212 = vpop.f32.mrf.mxu0
      %1213 = vmatprep.mubr.bf16.mxu0 0
      %1214 = vmatmul.mubr.bf16.gmra.mxu0 %v874
      %v1215 = vpop.f32.mrf.mxu0
      %v1216 = vadd.f32 0.0, %v1215
      %v1217 = vpop.f32.mrf.mxu0
      %v1218 = vpop.f32.mrf.mxu0
      %v1219 = vadd.f32 0.0, %v1218
      %v1220 = vpop.f32.mrf.mxu0
      %1221 = vmatprep.mubr.bf16.mxu0 0
      %1222 = vmatmul.mubr.bf16.gmra.mxu0 %v875
      %v1223 = vpop.f32.mrf.mxu0
      %v1224 = vadd.f32 0.0, %v1223
      %v1225 = vpop.f32.mrf.mxu0
      %v1226 = vpop.f32.mrf.mxu0
      %v1227 = vadd.f32 0.0, %v1226
      %v1228 = vpop.f32.mrf.mxu0
      %1229 = vmatprep.mubr.bf16.mxu0 0
      %1230 = vmatmul.mubr.bf16.gmra.mxu0 %v876
      %v1231 = vpop.f32.mrf.mxu0
      %v1232 = vadd.f32 0.0, %v1231
      %v1233 = vpop.f32.mrf.mxu0
      %v1234 = vpop.f32.mrf.mxu0
      %v1235 = vpop.f32.mrf.mxu0
      %1236 = vdwg.mxu0
      %v1237 = vpack.c.bf16 %v979, %v976
      %v1238 = vpack.c.bf16 %v987, %v984
      %v1239 = vpack.c.bf16 %v995, %v992
      %v1240 = vpack.c.bf16 %v1003, %v1000
      %v1241 = vpack.c.bf16 %v1011, %v1008
      %v1242 = vpack.c.bf16 %v1019, %v1016
      %v1243 = vpack.c.bf16 %v1027, %v1024
      %v1244 = vpack.c.bf16 %v1035, %v1032
      %v1245 = vpack.c.bf16 %v1043, %v1040
      %v1246 = vpack.c.bf16 %v1051, %v1048
      %v1247 = vpack.c.bf16 %v1059, %v1056
      %v1248 = vpack.c.bf16 %v1067, %v1064
      %v1249 = vpack.c.bf16 %v1075, %v1072
      %v1250 = vpack.c.bf16 %v1083, %v1080
      %v1251 = vpack.c.bf16 %v1091, %v1088
      %v1252 = vpack.c.bf16 %v1099, %v1096
      %v1253 = vpack.c.bf16 %v1107, %v1104
      %v1254 = vpack.c.bf16 %v1115, %v1112
      %v1255 = vpack.c.bf16 %v1123, %v1120
      %v1256 = vpack.c.bf16 %v1131, %v1128
      %v1257 = vpack.c.bf16 %v1139, %v1136
      %v1258 = vpack.c.bf16 %v1147, %v1144
      %v1259 = vpack.c.bf16 %v1155, %v1152
      %v1260 = vpack.c.bf16 %v1163, %v1160
      %v1261 = vpack.c.bf16 %v1171, %v1168
      %v1262 = vpack.c.bf16 %v1179, %v1176
      %v1263 = vpack.c.bf16 %v1187, %v1184
      %v1264 = vpack.c.bf16 %v1195, %v1192
      %v1265 = vpack.c.bf16 %v1203, %v1200
      %v1266 = vpack.c.bf16 %v1211, %v1208
      %v1267 = vpack.c.bf16 %v1219, %v1216
      %v1268 = vpack.c.bf16 %v1227, %v1224
      %v1269 = vpack.c.bf16 %v1232, %v1232
      %v1270 = vmax.bf16 %v1237, 0
      %v1271 = vmax.bf16 %v1238, 0
      %v1272 = vmax.bf16 %v1239, 0
      %v1273 = vmax.bf16 %v1240, 0
      %v1274 = vmax.bf16 %v1241, 0
      %v1275 = vmax.bf16 %v1242, 0
      %v1276 = vmax.bf16 %v1243, 0
      %v1277 = vmax.bf16 %v1244, 0
      %v1278 = vmax.bf16 %v1245, 0
      %v1279 = vmax.bf16 %v1246, 0
      %v1280 = vmax.bf16 %v1247, 0
      %v1281 = vmax.bf16 %v1248, 0
      %v1282 = vmax.bf16 %v1249, 0
      %v1283 = vmax.bf16 %v1250, 0
      %v1284 = vmax.bf16 %v1251, 0
      %v1285 = vmax.bf16 %v1252, 0
      %v1286 = vmax.bf16 %v1253, 0
      %v1287 = vmax.bf16 %v1254, 0
      %v1288 = vmax.bf16 %v1255, 0
      %v1289 = vmax.bf16 %v1256, 0
      %v1290 = vmax.bf16 %v1257, 0
      %v1291 = vmax.bf16 %v1258, 0
      %v1292 = vmax.bf16 %v1259, 0
      %v1293 = vmax.bf16 %v1260, 0
      %v1294 = vmax.bf16 %v1261, 0
      %v1295 = vmax.bf16 %v1262, 0
      %v1296 = vmax.bf16 %v1263, 0
      %v1297 = vmax.bf16 %v1264, 0
      %v1298 = vmax.bf16 %v1265, 0
      %v1299 = vmax.bf16 %v1266, 0
      %v1300 = vmax.bf16 %v1267, 0
      %v1301 = vmax.bf16 %v1268, 0
      %v1302 = vmax.bf16 %v1269, 0
      %v1303 = vld [vmem:[%s4] sm:$0xf]
      %v1304 = vld [vmem:[%s4 + $0x4] sm:$0xf]
      %v1305 = vld [vmem:[%s4 + $0x8] sm:$0xf]
      %v1306 = vld [vmem:[%s4 + $0xc] sm:$0xf]
      %v1307 = vld [vmem:[%s4 + $0x10] sm:$0xf]
      %v1308 = vld [vmem:[%s4 + $0x14] sm:$0xf]
      %v1309 = vld [vmem:[%s4 + $0x18] sm:$0xf]
      %v1310 = vld [vmem:[%s4 + $0x1c] sm:$0xf]
      %v1311 = vld [vmem:[%s4 + $0x20] sm:$0xf]
      %v1312 = vld [vmem:[%s4 + $0x24] sm:$0xf]
      %v1313 = vld [vmem:[%s4 + $0x28] sm:$0xf]
      %v1314 = vld [vmem:[%s4 + $0x2c] sm:$0xf]
      %v1315 = vld [vmem:[%s4 + $0x30] sm:$0xf]
      %v1316 = vld [vmem:[%s4 + $0x34] sm:$0xf]
      %v1317 = vld [vmem:[%s4 + $0x38] sm:$0xf]
      %v1318 = vld [vmem:[%s4 + $0x3c] sm:$0xf]
      %v1335 = vunpack.c.l.b16 %v1303
      %v1336 = vunpack.c.l.b16 %v1304
      %v1337 = vunpack.c.l.b16 %v1305
      %v1338 = vunpack.c.l.b16 %v1306
      %v1339 = vunpack.c.l.b16 %v1307
      %v1340 = vunpack.c.l.b16 %v1308
      %v1341 = vunpack.c.l.b16 %v1309
      %v1342 = vunpack.c.l.b16 %v1310
      %v1343 = vunpack.c.l.b16 %v1311
      %v1344 = vunpack.c.l.b16 %v1312
      %v1345 = vunpack.c.l.b16 %v1313
      %v1346 = vunpack.c.l.b16 %v1314
      %v1347 = vunpack.c.l.b16 %v1315
      %v1348 = vunpack.c.l.b16 %v1316
      %v1349 = vunpack.c.l.b16 %v1317
      %v1350 = vunpack.c.l.b16 %v1318
      %v1351 = vpack.c.b16 %v1336, %v1335
      %v1352 = vpack.c.b16 %v1338, %v1337
      %v1353 = vpack.c.b16 %v1340, %v1339
      %v1354 = vpack.c.b16 %v1342, %v1341
      %v1355 = vpack.c.b16 %v1344, %v1343
      %v1356 = vpack.c.b16 %v1346, %v1345
      %v1357 = vpack.c.b16 %v1348, %v1347
      %v1358 = vpack.c.b16 %v1350, %v1349
      %1367 = vmatprep.subr.bf16.mxu0 0
      %1368 = vmatpush1.bf16.msra.mxu0 %v1358
      %1369 = vmatprep.subr.bf16.mxu0 0
      %1370 = vmatpush1.bf16.msra.mxu0 %v1357
      %1371 = vmatprep.subr.bf16.mxu0 0
      %1372 = vmatpush1.bf16.msra.mxu0 %v1356
      %1373 = vmatprep.subr.bf16.mxu0 0
      %1374 = vmatpush1.bf16.msra.mxu0 %v1355
      %1375 = vmatprep.subr.bf16.mxu0 0
      %1376 = vmatpush1.bf16.msra.mxu0 %v1354
      %1377 = vmatprep.subr.bf16.mxu0 0
      %1378 = vmatpush1.bf16.msra.mxu0 %v1353
      %1379 = vmatprep.subr.bf16.mxu0 0
      %1380 = vmatpush1.bf16.msra.mxu0 %v1352
      %1381 = vmatprep.subr.bf16.mxu0 0
      %1382 = vmatpush1.bf16.msra.mxu0 %v1351
      %1383 = vmatprep.subr.bf16.mxu0 0
      %1384 = vmatpush2.bf16.msra.mxu0 0
      %1385 = vmatprep.subr.bf16.mxu0 0
      %1386 = vmatpush2.bf16.msra.mxu0 0
      %1387 = vmatprep.subr.bf16.mxu0 0
      %1388 = vmatpush2.bf16.msra.mxu0 0
      %1389 = vmatprep.subr.bf16.mxu0 0
      %1390 = vmatpush2.bf16.msra.mxu0 0
      %1391 = vmatprep.subr.bf16.mxu0 0
      %1392 = vmatpush2.bf16.msra.mxu0 0
      %1393 = vmatprep.subr.bf16.mxu0 0
      %1394 = vmatpush2.bf16.msra.mxu0 0
      %1395 = vmatprep.subr.bf16.mxu0 0
      %1396 = vmatpush2.bf16.msra.mxu0 0
      %1397 = vmatprep.subr.bf16.mxu0 0
      %1398 = vmatpush2.bf16.msra.mxu0 0
      %1399 = vmatprep.mubr.bf16.mxu0 0
      %1400 = vmatmul.mubr.bf16.gmra.mxu0 %v1270
      %v1401 = vpop.f32.mrf.mxu0
      %v1402 = vadd.f32 0.0, %v1401
      %v1403 = vpop.f32.mrf.mxu0
      %v1404 = vpop.f32.mrf.mxu0
      %v1405 = vadd.f32 0.0, %v1404
      %v1406 = vpop.f32.mrf.mxu0
      %1407 = vmatprep.mubr.bf16.mxu0 0
      %1408 = vmatmul.mubr.bf16.gmra.mxu0 %v1271
      %v1409 = vpop.f32.mrf.mxu0
      %v1410 = vadd.f32 0.0, %v1409
      %v1411 = vpop.f32.mrf.mxu0
      %v1412 = vpop.f32.mrf.mxu0
      %v1413 = vadd.f32 0.0, %v1412
      %v1414 = vpop.f32.mrf.mxu0
      %1415 = vmatprep.mubr.bf16.mxu0 0
      %1416 = vmatmul.mubr.bf16.gmra.mxu0 %v1272
      %v1417 = vpop.f32.mrf.mxu0
      %v1418 = vadd.f32 0.0, %v1417
      %v1419 = vpop.f32.mrf.mxu0
      %v1420 = vpop.f32.mrf.mxu0
      %v1421 = vadd.f32 0.0, %v1420
      %v1422 = vpop.f32.mrf.mxu0
      %1423 = vmatprep.mubr.bf16.mxu0 0
      %1424 = vmatmul.mubr.bf16.gmra.mxu0 %v1273
      %v1425 = vpop.f32.mrf.mxu0
      %v1426 = vadd.f32 0.0, %v1425
      %v1427 = vpop.f32.mrf.mxu0
      %v1428 = vpop.f32.mrf.mxu0
      %v1429 = vadd.f32 0.0, %v1428
      %v1430 = vpop.f32.mrf.mxu0
      %1431 = vmatprep.mubr.bf16.mxu0 0
      %1432 = vmatmul.mubr.bf16.gmra.mxu0 %v1274
      %v1433 = vpop.f32.mrf.mxu0
      %v1434 = vadd.f32 0.0, %v1433
      %v1435 = vpop.f32.mrf.mxu0
      %v1436 = vpop.f32.mrf.mxu0
      %v1437 = vadd.f32 0.0, %v1436
      %v1438 = vpop.f32.mrf.mxu0
      %1439 = vmatprep.mubr.bf16.mxu0 0
      %1440 = vmatmul.mubr.bf16.gmra.mxu0 %v1275
      %v1441 = vpop.f32.mrf.mxu0
      %v1442 = vadd.f32 0.0, %v1441
      %v1443 = vpop.f32.mrf.mxu0
      %v1444 = vpop.f32.mrf.mxu0
      %v1445 = vadd.f32 0.0, %v1444
      %v1446 = vpop.f32.mrf.mxu0
      %1447 = vmatprep.mubr.bf16.mxu0 0
      %1448 = vmatmul.mubr.bf16.gmra.mxu0 %v1276
      %v1449 = vpop.f32.mrf.mxu0
      %v1450 = vadd.f32 0.0, %v1449
      %v1451 = vpop.f32.mrf.mxu0
      %v1452 = vpop.f32.mrf.mxu0
      %v1453 = vadd.f32 0.0, %v1452
      %v1454 = vpop.f32.mrf.mxu0
      %1455 = vmatprep.mubr.bf16.mxu0 0
      %1456 = vmatmul.mubr.bf16.gmra.mxu0 %v1277
      %v1457 = vpop.f32.mrf.mxu0
      %v1458 = vadd.f32 0.0, %v1457
      %v1459 = vpop.f32.mrf.mxu0
      %v1460 = vpop.f32.mrf.mxu0
      %v1461 = vadd.f32 0.0, %v1460
      %v1462 = vpop.f32.mrf.mxu0
      %1463 = vmatprep.mubr.bf16.mxu0 0
      %1464 = vmatmul.mubr.bf16.gmra.mxu0 %v1278
      %v1465 = vpop.f32.mrf.mxu0
      %v1466 = vadd.f32 0.0, %v1465
      %v1467 = vpop.f32.mrf.mxu0
      %v1468 = vpop.f32.mrf.mxu0
      %v1469 = vadd.f32 0.0, %v1468
      %v1470 = vpop.f32.mrf.mxu0
      %1471 = vmatprep.mubr.bf16.mxu0 0
      %1472 = vmatmul.mubr.bf16.gmra.mxu0 %v1279
      %v1473 = vpop.f32.mrf.mxu0
      %v1474 = vadd.f32 0.0, %v1473
      %v1475 = vpop.f32.mrf.mxu0
      %v1476 = vpop.f32.mrf.mxu0
      %v1477 = vadd.f32 0.0, %v1476
      %v1478 = vpop.f32.mrf.mxu0
      %1479 = vmatprep.mubr.bf16.mxu0 0
      %1480 = vmatmul.mubr.bf16.gmra.mxu0 %v1280
      %v1481 = vpop.f32.mrf.mxu0
      %v1482 = vadd.f32 0.0, %v1481
      %v1483 = vpop.f32.mrf.mxu0
      %v1484 = vpop.f32.mrf.mxu0
      %v1485 = vadd.f32 0.0, %v1484
      %v1486 = vpop.f32.mrf.mxu0
      %1487 = vmatprep.mubr.bf16.mxu0 0
      %1488 = vmatmul.mubr.bf16.gmra.mxu0 %v1281
      %v1489 = vpop.f32.mrf.mxu0
      %v1490 = vadd.f32 0.0, %v1489
      %v1491 = vpop.f32.mrf.mxu0
      %v1492 = vpop.f32.mrf.mxu0
      %v1493 = vadd.f32 0.0, %v1492
      %v1494 = vpop.f32.mrf.mxu0
      %1495 = vmatprep.mubr.bf16.mxu0 0
      %1496 = vmatmul.mubr.bf16.gmra.mxu0 %v1282
      %v1497 = vpop.f32.mrf.mxu0
      %v1498 = vadd.f32 0.0, %v1497
      %v1499 = vpop.f32.mrf.mxu0
      %v1500 = vpop.f32.mrf.mxu0
      %v1501 = vadd.f32 0.0, %v1500
      %v1502 = vpop.f32.mrf.mxu0
      %1503 = vmatprep.mubr.bf16.mxu0 0
      %1504 = vmatmul.mubr.bf16.gmra.mxu0 %v1283
      %v1505 = vpop.f32.mrf.mxu0
      %v1506 = vadd.f32 0.0, %v1505
      %v1507 = vpop.f32.mrf.mxu0
      %v1508 = vpop.f32.mrf.mxu0
      %v1509 = vadd.f32 0.0, %v1508
      %v1510 = vpop.f32.mrf.mxu0
      %1511 = vmatprep.mubr.bf16.mxu0 0
      %1512 = vmatmul.mubr.bf16.gmra.mxu0 %v1284
      %v1513 = vpop.f32.mrf.mxu0
      %v1514 = vadd.f32 0.0, %v1513
      %v1515 = vpop.f32.mrf.mxu0
      %v1516 = vpop.f32.mrf.mxu0
      %v1517 = vadd.f32 0.0, %v1516
      %v1518 = vpop.f32.mrf.mxu0
      %1519 = vmatprep.mubr.bf16.mxu0 0
      %1520 = vmatmul.mubr.bf16.gmra.mxu0 %v1285
      %v1521 = vpop.f32.mrf.mxu0
      %v1522 = vadd.f32 0.0, %v1521
      %v1523 = vpop.f32.mrf.mxu0
      %v1524 = vpop.f32.mrf.mxu0
      %v1525 = vadd.f32 0.0, %v1524
      %v1526 = vpop.f32.mrf.mxu0
      %1527 = vmatprep.mubr.bf16.mxu0 0
      %1528 = vmatmul.mubr.bf16.gmra.mxu0 %v1286
      %v1529 = vpop.f32.mrf.mxu0
      %v1530 = vadd.f32 0.0, %v1529
      %v1531 = vpop.f32.mrf.mxu0
      %v1532 = vpop.f32.mrf.mxu0
      %v1533 = vadd.f32 0.0, %v1532
      %v1534 = vpop.f32.mrf.mxu0
      %1535 = vmatprep.mubr.bf16.mxu0 0
      %1536 = vmatmul.mubr.bf16.gmra.mxu0 %v1287
      %v1537 = vpop.f32.mrf.mxu0
      %v1538 = vadd.f32 0.0, %v1537
      %v1539 = vpop.f32.mrf.mxu0
      %v1540 = vpop.f32.mrf.mxu0
      %v1541 = vadd.f32 0.0, %v1540
      %v1542 = vpop.f32.mrf.mxu0
      %1543 = vmatprep.mubr.bf16.mxu0 0
      %1544 = vmatmul.mubr.bf16.gmra.mxu0 %v1288
      %v1545 = vpop.f32.mrf.mxu0
      %v1546 = vadd.f32 0.0, %v1545
      %v1547 = vpop.f32.mrf.mxu0
      %v1548 = vpop.f32.mrf.mxu0
      %v1549 = vadd.f32 0.0, %v1548
      %v1550 = vpop.f32.mrf.mxu0
      %1551 = vmatprep.mubr.bf16.mxu0 0
      %1552 = vmatmul.mubr.bf16.gmra.mxu0 %v1289
      %v1553 = vpop.f32.mrf.mxu0
      %v1554 = vadd.f32 0.0, %v1553
      %v1555 = vpop.f32.mrf.mxu0
      %v1556 = vpop.f32.mrf.mxu0
      %v1557 = vadd.f32 0.0, %v1556
      %v1558 = vpop.f32.mrf.mxu0
      %1559 = vmatprep.mubr.bf16.mxu0 0
      %1560 = vmatmul.mubr.bf16.gmra.mxu0 %v1290
      %v1561 = vpop.f32.mrf.mxu0
      %v1562 = vadd.f32 0.0, %v1561
      %v1563 = vpop.f32.mrf.mxu0
      %v1564 = vpop.f32.mrf.mxu0
      %v1565 = vadd.f32 0.0, %v1564
      %v1566 = vpop.f32.mrf.mxu0
      %1567 = vmatprep.mubr.bf16.mxu0 0
      %1568 = vmatmul.mubr.bf16.gmra.mxu0 %v1291
      %v1569 = vpop.f32.mrf.mxu0
      %v1570 = vadd.f32 0.0, %v1569
      %v1571 = vpop.f32.mrf.mxu0
      %v1572 = vpop.f32.mrf.mxu0
      %v1573 = vadd.f32 0.0, %v1572
      %v1574 = vpop.f32.mrf.mxu0
      %1575 = vmatprep.mubr.bf16.mxu0 0
      %1576 = vmatmul.mubr.bf16.gmra.mxu0 %v1292
      %v1577 = vpop.f32.mrf.mxu0
      %v1578 = vadd.f32 0.0, %v1577
      %v1579 = vpop.f32.mrf.mxu0
      %v1580 = vpop.f32.mrf.mxu0
      %v1581 = vadd.f32 0.0, %v1580
      %v1582 = vpop.f32.mrf.mxu0
      %1583 = vmatprep.mubr.bf16.mxu0 0
      %1584 = vmatmul.mubr.bf16.gmra.mxu0 %v1293
      %v1585 = vpop.f32.mrf.mxu0
      %v1586 = vadd.f32 0.0, %v1585
      %v1587 = vpop.f32.mrf.mxu0
      %v1588 = vpop.f32.mrf.mxu0
      %v1589 = vadd.f32 0.0, %v1588
      %v1590 = vpop.f32.mrf.mxu0
      %1591 = vmatprep.mubr.bf16.mxu0 0
      %1592 = vmatmul.mubr.bf16.gmra.mxu0 %v1294
      %v1593 = vpop.f32.mrf.mxu0
      %v1594 = vadd.f32 0.0, %v1593
      %v1595 = vpop.f32.mrf.mxu0
      %v1596 = vpop.f32.mrf.mxu0
      %v1597 = vadd.f32 0.0, %v1596
      %v1598 = vpop.f32.mrf.mxu0
      %1599 = vmatprep.mubr.bf16.mxu0 0
      %1600 = vmatmul.mubr.bf16.gmra.mxu0 %v1295
      %v1601 = vpop.f32.mrf.mxu0
      %v1602 = vadd.f32 0.0, %v1601
      %v1603 = vpop.f32.mrf.mxu0
      %v1604 = vpop.f32.mrf.mxu0
      %v1605 = vadd.f32 0.0, %v1604
      %v1606 = vpop.f32.mrf.mxu0
      %1607 = vmatprep.mubr.bf16.mxu0 0
      %1608 = vmatmul.mubr.bf16.gmra.mxu0 %v1296
      %v1609 = vpop.f32.mrf.mxu0
      %v1610 = vadd.f32 0.0, %v1609
      %v1611 = vpop.f32.mrf.mxu0
      %v1612 = vpop.f32.mrf.mxu0
      %v1613 = vadd.f32 0.0, %v1612
      %v1614 = vpop.f32.mrf.mxu0
      %1615 = vmatprep.mubr.bf16.mxu0 0
      %1616 = vmatmul.mubr.bf16.gmra.mxu0 %v1297
      %v1617 = vpop.f32.mrf.mxu0
      %v1618 = vadd.f32 0.0, %v1617
      %v1619 = vpop.f32.mrf.mxu0
      %v1620 = vpop.f32.mrf.mxu0
      %v1621 = vadd.f32 0.0, %v1620
      %v1622 = vpop.f32.mrf.mxu0
      %1623 = vmatprep.mubr.bf16.mxu0 0
      %1624 = vmatmul.mubr.bf16.gmra.mxu0 %v1298
      %v1625 = vpop.f32.mrf.mxu0
      %v1626 = vadd.f32 0.0, %v1625
      %v1627 = vpop.f32.mrf.mxu0
      %v1628 = vpop.f32.mrf.mxu0
      %v1629 = vadd.f32 0.0, %v1628
      %v1630 = vpop.f32.mrf.mxu0
      %1631 = vmatprep.mubr.bf16.mxu0 0
      %1632 = vmatmul.mubr.bf16.gmra.mxu0 %v1299
      %v1633 = vpop.f32.mrf.mxu0
      %v1634 = vadd.f32 0.0, %v1633
      %v1635 = vpop.f32.mrf.mxu0
      %v1636 = vpop.f32.mrf.mxu0
      %v1637 = vadd.f32 0.0, %v1636
      %v1638 = vpop.f32.mrf.mxu0
      %1639 = vmatprep.mubr.bf16.mxu0 0
      %1640 = vmatmul.mubr.bf16.gmra.mxu0 %v1300
      %v1641 = vpop.f32.mrf.mxu0
      %v1642 = vadd.f32 0.0, %v1641
      %v1643 = vpop.f32.mrf.mxu0
      %v1644 = vpop.f32.mrf.mxu0
      %v1645 = vadd.f32 0.0, %v1644
      %v1646 = vpop.f32.mrf.mxu0
      %1647 = vmatprep.mubr.bf16.mxu0 0
      %1648 = vmatmul.mubr.bf16.gmra.mxu0 %v1301
      %v1649 = vpop.f32.mrf.mxu0
      %v1650 = vadd.f32 0.0, %v1649
      %v1651 = vpop.f32.mrf.mxu0
      %v1652 = vpop.f32.mrf.mxu0
      %v1653 = vadd.f32 0.0, %v1652
      %v1654 = vpop.f32.mrf.mxu0
      %1655 = vmatprep.mubr.bf16.mxu0 0
      %1656 = vmatmul.mubr.bf16.gmra.mxu0 %v1302
      %v1657 = vpop.f32.mrf.mxu0
      %v1658 = vadd.f32 0.0, %v1657
      %v1659 = vpop.f32.mrf.mxu0
      %v1660 = vpop.f32.mrf.mxu0
      %v1661 = vpop.f32.mrf.mxu0
      %1662 = vdwg.mxu0
      %v1663 = vpack.c.bf16 %v1405, %v1402
      %v1664 = vpack.c.bf16 %v1413, %v1410
      %v1665 = vpack.c.bf16 %v1421, %v1418
      %v1666 = vpack.c.bf16 %v1429, %v1426
      %v1667 = vpack.c.bf16 %v1437, %v1434
      %v1668 = vpack.c.bf16 %v1445, %v1442
      %v1669 = vpack.c.bf16 %v1453, %v1450
      %v1670 = vpack.c.bf16 %v1461, %v1458
      %v1671 = vpack.c.bf16 %v1469, %v1466
      %v1672 = vpack.c.bf16 %v1477, %v1474
      %v1673 = vpack.c.bf16 %v1485, %v1482
      %v1674 = vpack.c.bf16 %v1493, %v1490
      %v1675 = vpack.c.bf16 %v1501, %v1498
      %v1676 = vpack.c.bf16 %v1509, %v1506
      %v1677 = vpack.c.bf16 %v1517, %v1514
      %v1678 = vpack.c.bf16 %v1525, %v1522
      %v1679 = vpack.c.bf16 %v1533, %v1530
      %v1680 = vpack.c.bf16 %v1541, %v1538
      %v1681 = vpack.c.bf16 %v1549, %v1546
      %v1682 = vpack.c.bf16 %v1557, %v1554
      %v1683 = vpack.c.bf16 %v1565, %v1562
      %v1684 = vpack.c.bf16 %v1573, %v1570
      %v1685 = vpack.c.bf16 %v1581, %v1578
      %v1686 = vpack.c.bf16 %v1589, %v1586
      %v1687 = vpack.c.bf16 %v1597, %v1594
      %v1688 = vpack.c.bf16 %v1605, %v1602
      %v1689 = vpack.c.bf16 %v1613, %v1610
      %v1690 = vpack.c.bf16 %v1621, %v1618
      %v1691 = vpack.c.bf16 %v1629, %v1626
      %v1692 = vpack.c.bf16 %v1637, %v1634
      %v1693 = vpack.c.bf16 %v1645, %v1642
      %v1694 = vpack.c.bf16 %v1653, %v1650
      %v1695 = vpack.c.bf16 %v1658, %v1658
      %v1696 = vmax.bf16 %v1663, 0
      %v1697 = vmax.bf16 %v1664, 0
      %v1698 = vmax.bf16 %v1665, 0
      %v1699 = vmax.bf16 %v1666, 0
      %v1700 = vmax.bf16 %v1667, 0
      %v1701 = vmax.bf16 %v1668, 0
      %v1702 = vmax.bf16 %v1669, 0
      %v1703 = vmax.bf16 %v1670, 0
      %v1704 = vmax.bf16 %v1671, 0
      %v1705 = vmax.bf16 %v1672, 0
      %v1706 = vmax.bf16 %v1673, 0
      %v1707 = vmax.bf16 %v1674, 0
      %v1708 = vmax.bf16 %v1675, 0
      %v1709 = vmax.bf16 %v1676, 0
      %v1710 = vmax.bf16 %v1677, 0
      %v1711 = vmax.bf16 %v1678, 0
      %v1712 = vmax.bf16 %v1679, 0
      %v1713 = vmax.bf16 %v1680, 0
      %v1714 = vmax.bf16 %v1681, 0
      %v1715 = vmax.bf16 %v1682, 0
      %v1716 = vmax.bf16 %v1683, 0
      %v1717 = vmax.bf16 %v1684, 0
      %v1718 = vmax.bf16 %v1685, 0
      %v1719 = vmax.bf16 %v1686, 0
      %v1720 = vmax.bf16 %v1687, 0
      %v1721 = vmax.bf16 %v1688, 0
      %v1722 = vmax.bf16 %v1689, 0
      %v1723 = vmax.bf16 %v1690, 0
      %v1724 = vmax.bf16 %v1691, 0
      %v1725 = vmax.bf16 %v1692, 0
      %v1726 = vmax.bf16 %v1693, 0
      %v1727 = vmax.bf16 %v1694, 0
      %v1728 = vmax.bf16 %v1695, 0
      %v1729 = vld [vmem:[%s5] sm:$0xf]
      %v1730 = vld [vmem:[%s5 + $0x4] sm:$0xf]
      %v1731 = vld [vmem:[%s5 + $0x8] sm:$0xf]
      %v1732 = vld [vmem:[%s5 + $0xc] sm:$0xf]
      %v1733 = vld [vmem:[%s5 + $0x10] sm:$0xf]
      %v1734 = vld [vmem:[%s5 + $0x14] sm:$0xf]
      %v1735 = vld [vmem:[%s5 + $0x18] sm:$0xf]
      %v1736 = vld [vmem:[%s5 + $0x1c] sm:$0xf]
      %v1737 = vld [vmem:[%s5 + $0x20] sm:$0xf]
      %v1738 = vld [vmem:[%s5 + $0x24] sm:$0xf]
      %v1739 = vld [vmem:[%s5 + $0x28] sm:$0xf]
      %v1740 = vld [vmem:[%s5 + $0x2c] sm:$0xf]
      %v1741 = vld [vmem:[%s5 + $0x30] sm:$0xf]
      %v1742 = vld [vmem:[%s5 + $0x34] sm:$0xf]
      %v1743 = vld [vmem:[%s5 + $0x38] sm:$0xf]
      %v1744 = vld [vmem:[%s5 + $0x3c] sm:$0xf]
      %v1761 = vunpack.c.l.b16 %v1729
      %v1762 = vunpack.c.l.b16 %v1730
      %v1763 = vunpack.c.l.b16 %v1731
      %v1764 = vunpack.c.l.b16 %v1732
      %v1765 = vunpack.c.l.b16 %v1733
      %v1766 = vunpack.c.l.b16 %v1734
      %v1767 = vunpack.c.l.b16 %v1735
      %v1768 = vunpack.c.l.b16 %v1736
      %v1769 = vunpack.c.l.b16 %v1737
      %v1770 = vunpack.c.l.b16 %v1738
      %v1771 = vunpack.c.l.b16 %v1739
      %v1772 = vunpack.c.l.b16 %v1740
      %v1773 = vunpack.c.l.b16 %v1741
      %v1774 = vunpack.c.l.b16 %v1742
      %v1775 = vunpack.c.l.b16 %v1743
      %v1776 = vunpack.c.l.b16 %v1744
      %v1777 = vpack.c.b16 %v1762, %v1761
      %v1778 = vpack.c.b16 %v1764, %v1763
      %v1779 = vpack.c.b16 %v1766, %v1765
      %v1780 = vpack.c.b16 %v1768, %v1767
      %v1781 = vpack.c.b16 %v1770, %v1769
      %v1782 = vpack.c.b16 %v1772, %v1771
      %v1783 = vpack.c.b16 %v1774, %v1773
      %v1784 = vpack.c.b16 %v1776, %v1775
      %1793 = vmatprep.subr.bf16.mxu0 0
      %1794 = vmatpush1.bf16.msra.mxu0 %v1784
      %1795 = vmatprep.subr.bf16.mxu0 0
      %1796 = vmatpush1.bf16.msra.mxu0 %v1783
      %1797 = vmatprep.subr.bf16.mxu0 0
      %1798 = vmatpush1.bf16.msra.mxu0 %v1782
      %1799 = vmatprep.subr.bf16.mxu0 0
      %1800 = vmatpush1.bf16.msra.mxu0 %v1781
      %1801 = vmatprep.subr.bf16.mxu0 0
      %1802 = vmatpush1.bf16.msra.mxu0 %v1780
      %1803 = vmatprep.subr.bf16.mxu0 0
      %1804 = vmatpush1.bf16.msra.mxu0 %v1779
      %1805 = vmatprep.subr.bf16.mxu0 0
      %1806 = vmatpush1.bf16.msra.mxu0 %v1778
      %1807 = vmatprep.subr.bf16.mxu0 0
      %1808 = vmatpush1.bf16.msra.mxu0 %v1777
      %1809 = vmatprep.subr.bf16.mxu0 0
      %1810 = vmatpush2.bf16.msra.mxu0 0
      %1811 = vmatprep.subr.bf16.mxu0 0
      %1812 = vmatpush2.bf16.msra.mxu0 0
      %1813 = vmatprep.subr.bf16.mxu0 0
      %1814 = vmatpush2.bf16.msra.mxu0 0
      %1815 = vmatprep.subr.bf16.mxu0 0
      %1816 = vmatpush2.bf16.msra.mxu0 0
      %1817 = vmatprep.subr.bf16.mxu0 0
      %1818 = vmatpush2.bf16.msra.mxu0 0
      %1819 = vmatprep.subr.bf16.mxu0 0
      %1820 = vmatpush2.bf16.msra.mxu0 0
      %1821 = vmatprep.subr.bf16.mxu0 0
      %1822 = vmatpush2.bf16.msra.mxu0 0
      %1823 = vmatprep.subr.bf16.mxu0 0
      %1824 = vmatpush2.bf16.msra.mxu0 0
      %1825 = vmatprep.mubr.bf16.mxu0 0
      %1826 = vmatmul.mubr.bf16.gmra.mxu0 %v1696
      %v1827 = vpop.f32.mrf.mxu0
      %v1828 = vadd.f32 0.0, %v1827
      %v1829 = vpop.f32.mrf.mxu0
      %v1830 = vpop.f32.mrf.mxu0
      %v1831 = vadd.f32 0.0, %v1830
      %v1832 = vpop.f32.mrf.mxu0
      %1833 = vmatprep.mubr.bf16.mxu0 0
      %1834 = vmatmul.mubr.bf16.gmra.mxu0 %v1697
      %v1835 = vpop.f32.mrf.mxu0
      %v1836 = vadd.f32 0.0, %v1835
      %v1837 = vpop.f32.mrf.mxu0
      %v1838 = vpop.f32.mrf.mxu0
      %v1839 = vadd.f32 0.0, %v1838
      %v1840 = vpop.f32.mrf.mxu0
      %1841 = vmatprep.mubr.bf16.mxu0 0
      %1842 = vmatmul.mubr.bf16.gmra.mxu0 %v1698
      %v1843 = vpop.f32.mrf.mxu0
      %v1844 = vadd.f32 0.0, %v1843
      %v1845 = vpop.f32.mrf.mxu0
      %v1846 = vpop.f32.mrf.mxu0
      %v1847 = vadd.f32 0.0, %v1846
      %v1848 = vpop.f32.mrf.mxu0
      %1849 = vmatprep.mubr.bf16.mxu0 0
      %1850 = vmatmul.mubr.bf16.gmra.mxu0 %v1699
      %v1851 = vpop.f32.mrf.mxu0
      %v1852 = vadd.f32 0.0, %v1851
      %v1853 = vpop.f32.mrf.mxu0
      %v1854 = vpop.f32.mrf.mxu0
      %v1855 = vadd.f32 0.0, %v1854
      %v1856 = vpop.f32.mrf.mxu0
      %1857 = vmatprep.mubr.bf16.mxu0 0
      %1858 = vmatmul.mubr.bf16.gmra.mxu0 %v1700
      %v1859 = vpop.f32.mrf.mxu0
      %v1860 = vadd.f32 0.0, %v1859
      %v1861 = vpop.f32.mrf.mxu0
      %v1862 = vpop.f32.mrf.mxu0
      %v1863 = vadd.f32 0.0, %v1862
      %v1864 = vpop.f32.mrf.mxu0
      %1865 = vmatprep.mubr.bf16.mxu0 0
      %1866 = vmatmul.mubr.bf16.gmra.mxu0 %v1701
      %v1867 = vpop.f32.mrf.mxu0
      %v1868 = vadd.f32 0.0, %v1867
      %v1869 = vpop.f32.mrf.mxu0
      %v1870 = vpop.f32.mrf.mxu0
      %v1871 = vadd.f32 0.0, %v1870
      %v1872 = vpop.f32.mrf.mxu0
      %1873 = vmatprep.mubr.bf16.mxu0 0
      %1874 = vmatmul.mubr.bf16.gmra.mxu0 %v1702
      %v1875 = vpop.f32.mrf.mxu0
      %v1876 = vadd.f32 0.0, %v1875
      %v1877 = vpop.f32.mrf.mxu0
      %v1878 = vpop.f32.mrf.mxu0
      %v1879 = vadd.f32 0.0, %v1878
      %v1880 = vpop.f32.mrf.mxu0
      %1881 = vmatprep.mubr.bf16.mxu0 0
      %1882 = vmatmul.mubr.bf16.gmra.mxu0 %v1703
      %v1883 = vpop.f32.mrf.mxu0
      %v1884 = vadd.f32 0.0, %v1883
      %v1885 = vpop.f32.mrf.mxu0
      %v1886 = vpop.f32.mrf.mxu0
      %v1887 = vadd.f32 0.0, %v1886
      %v1888 = vpop.f32.mrf.mxu0
      %1889 = vmatprep.mubr.bf16.mxu0 0
      %1890 = vmatmul.mubr.bf16.gmra.mxu0 %v1704
      %v1891 = vpop.f32.mrf.mxu0
      %v1892 = vadd.f32 0.0, %v1891
      %v1893 = vpop.f32.mrf.mxu0
      %v1894 = vpop.f32.mrf.mxu0
      %v1895 = vadd.f32 0.0, %v1894
      %v1896 = vpop.f32.mrf.mxu0
      %1897 = vmatprep.mubr.bf16.mxu0 0
      %1898 = vmatmul.mubr.bf16.gmra.mxu0 %v1705
      %v1899 = vpop.f32.mrf.mxu0
      %v1900 = vadd.f32 0.0, %v1899
      %v1901 = vpop.f32.mrf.mxu0
      %v1902 = vpop.f32.mrf.mxu0
      %v1903 = vadd.f32 0.0, %v1902
      %v1904 = vpop.f32.mrf.mxu0
      %1905 = vmatprep.mubr.bf16.mxu0 0
      %1906 = vmatmul.mubr.bf16.gmra.mxu0 %v1706
      %v1907 = vpop.f32.mrf.mxu0
      %v1908 = vadd.f32 0.0, %v1907
      %v1909 = vpop.f32.mrf.mxu0
      %v1910 = vpop.f32.mrf.mxu0
      %v1911 = vadd.f32 0.0, %v1910
      %v1912 = vpop.f32.mrf.mxu0
      %1913 = vmatprep.mubr.bf16.mxu0 0
      %1914 = vmatmul.mubr.bf16.gmra.mxu0 %v1707
      %v1915 = vpop.f32.mrf.mxu0
      %v1916 = vadd.f32 0.0, %v1915
      %v1917 = vpop.f32.mrf.mxu0
      %v1918 = vpop.f32.mrf.mxu0
      %v1919 = vadd.f32 0.0, %v1918
      %v1920 = vpop.f32.mrf.mxu0
      %1921 = vmatprep.mubr.bf16.mxu0 0
      %1922 = vmatmul.mubr.bf16.gmra.mxu0 %v1708
      %v1923 = vpop.f32.mrf.mxu0
      %v1924 = vadd.f32 0.0, %v1923
      %v1925 = vpop.f32.mrf.mxu0
      %v1926 = vpop.f32.mrf.mxu0
      %v1927 = vadd.f32 0.0, %v1926
      %v1928 = vpop.f32.mrf.mxu0
      %1929 = vmatprep.mubr.bf16.mxu0 0
      %1930 = vmatmul.mubr.bf16.gmra.mxu0 %v1709
      %v1931 = vpop.f32.mrf.mxu0
      %v1932 = vadd.f32 0.0, %v1931
      %v1933 = vpop.f32.mrf.mxu0
      %v1934 = vpop.f32.mrf.mxu0
      %v1935 = vadd.f32 0.0, %v1934
      %v1936 = vpop.f32.mrf.mxu0
      %1937 = vmatprep.mubr.bf16.mxu0 0
      %1938 = vmatmul.mubr.bf16.gmra.mxu0 %v1710
      %v1939 = vpop.f32.mrf.mxu0
      %v1940 = vadd.f32 0.0, %v1939
      %v1941 = vpop.f32.mrf.mxu0
      %v1942 = vpop.f32.mrf.mxu0
      %v1943 = vadd.f32 0.0, %v1942
      %v1944 = vpop.f32.mrf.mxu0
      %1945 = vmatprep.mubr.bf16.mxu0 0
      %1946 = vmatmul.mubr.bf16.gmra.mxu0 %v1711
      %v1947 = vpop.f32.mrf.mxu0
      %v1948 = vadd.f32 0.0, %v1947
      %v1949 = vpop.f32.mrf.mxu0
      %v1950 = vpop.f32.mrf.mxu0
      %v1951 = vadd.f32 0.0, %v1950
      %v1952 = vpop.f32.mrf.mxu0
      %1953 = vmatprep.mubr.bf16.mxu0 0
      %1954 = vmatmul.mubr.bf16.gmra.mxu0 %v1712
      %v1955 = vpop.f32.mrf.mxu0
      %v1956 = vadd.f32 0.0, %v1955
      %v1957 = vpop.f32.mrf.mxu0
      %v1958 = vpop.f32.mrf.mxu0
      %v1959 = vadd.f32 0.0, %v1958
      %v1960 = vpop.f32.mrf.mxu0
      %1961 = vmatprep.mubr.bf16.mxu0 0
      %1962 = vmatmul.mubr.bf16.gmra.mxu0 %v1713
      %v1963 = vpop.f32.mrf.mxu0
      %v1964 = vadd.f32 0.0, %v1963
      %v1965 = vpop.f32.mrf.mxu0
      %v1966 = vpop.f32.mrf.mxu0
      %v1967 = vadd.f32 0.0, %v1966
      %v1968 = vpop.f32.mrf.mxu0
      %1969 = vmatprep.mubr.bf16.mxu0 0
      %1970 = vmatmul.mubr.bf16.gmra.mxu0 %v1714
      %v1971 = vpop.f32.mrf.mxu0
      %v1972 = vadd.f32 0.0, %v1971
      %v1973 = vpop.f32.mrf.mxu0
      %v1974 = vpop.f32.mrf.mxu0
      %v1975 = vadd.f32 0.0, %v1974
      %v1976 = vpop.f32.mrf.mxu0
      %1977 = vmatprep.mubr.bf16.mxu0 0
      %1978 = vmatmul.mubr.bf16.gmra.mxu0 %v1715
      %v1979 = vpop.f32.mrf.mxu0
      %v1980 = vadd.f32 0.0, %v1979
      %v1981 = vpop.f32.mrf.mxu0
      %v1982 = vpop.f32.mrf.mxu0
      %v1983 = vadd.f32 0.0, %v1982
      %v1984 = vpop.f32.mrf.mxu0
      %1985 = vmatprep.mubr.bf16.mxu0 0
      %1986 = vmatmul.mubr.bf16.gmra.mxu0 %v1716
      %v1987 = vpop.f32.mrf.mxu0
      %v1988 = vadd.f32 0.0, %v1987
      %v1989 = vpop.f32.mrf.mxu0
      %v1990 = vpop.f32.mrf.mxu0
      %v1991 = vadd.f32 0.0, %v1990
      %v1992 = vpop.f32.mrf.mxu0
      %1993 = vmatprep.mubr.bf16.mxu0 0
      %1994 = vmatmul.mubr.bf16.gmra.mxu0 %v1717
      %v1995 = vpop.f32.mrf.mxu0
      %v1996 = vadd.f32 0.0, %v1995
      %v1997 = vpop.f32.mrf.mxu0
      %v1998 = vpop.f32.mrf.mxu0
      %v1999 = vadd.f32 0.0, %v1998
      %v2000 = vpop.f32.mrf.mxu0
      %2001 = vmatprep.mubr.bf16.mxu0 0
      %2002 = vmatmul.mubr.bf16.gmra.mxu0 %v1718
      %v2003 = vpop.f32.mrf.mxu0
      %v2004 = vadd.f32 0.0, %v2003
      %v2005 = vpop.f32.mrf.mxu0
      %v2006 = vpop.f32.mrf.mxu0
      %v2007 = vadd.f32 0.0, %v2006
      %v2008 = vpop.f32.mrf.mxu0
      %2009 = vmatprep.mubr.bf16.mxu0 0
      %2010 = vmatmul.mubr.bf16.gmra.mxu0 %v1719
      %v2011 = vpop.f32.mrf.mxu0
      %v2012 = vadd.f32 0.0, %v2011
      %v2013 = vpop.f32.mrf.mxu0
      %v2014 = vpop.f32.mrf.mxu0
      %v2015 = vadd.f32 0.0, %v2014
      %v2016 = vpop.f32.mrf.mxu0
      %2017 = vmatprep.mubr.bf16.mxu0 0
      %2018 = vmatmul.mubr.bf16.gmra.mxu0 %v1720
      %v2019 = vpop.f32.mrf.mxu0
      %v2020 = vadd.f32 0.0, %v2019
      %v2021 = vpop.f32.mrf.mxu0
      %v2022 = vpop.f32.mrf.mxu0
      %v2023 = vadd.f32 0.0, %v2022
      %v2024 = vpop.f32.mrf.mxu0
      %2025 = vmatprep.mubr.bf16.mxu0 0
      %2026 = vmatmul.mubr.bf16.gmra.mxu0 %v1721
      %v2027 = vpop.f32.mrf.mxu0
      %v2028 = vadd.f32 0.0, %v2027
      %v2029 = vpop.f32.mrf.mxu0
      %v2030 = vpop.f32.mrf.mxu0
      %v2031 = vadd.f32 0.0, %v2030
      %v2032 = vpop.f32.mrf.mxu0
      %2033 = vmatprep.mubr.bf16.mxu0 0
      %2034 = vmatmul.mubr.bf16.gmra.mxu0 %v1722
      %v2035 = vpop.f32.mrf.mxu0
      %v2036 = vadd.f32 0.0, %v2035
      %v2037 = vpop.f32.mrf.mxu0
      %v2038 = vpop.f32.mrf.mxu0
      %v2039 = vadd.f32 0.0, %v2038
      %v2040 = vpop.f32.mrf.mxu0
      %2041 = vmatprep.mubr.bf16.mxu0 0
      %2042 = vmatmul.mubr.bf16.gmra.mxu0 %v1723
      %v2043 = vpop.f32.mrf.mxu0
      %v2044 = vadd.f32 0.0, %v2043
      %v2045 = vpop.f32.mrf.mxu0
      %v2046 = vpop.f32.mrf.mxu0
      %v2047 = vadd.f32 0.0, %v2046
      %v2048 = vpop.f32.mrf.mxu0
      %2049 = vmatprep.mubr.bf16.mxu0 0
      %2050 = vmatmul.mubr.bf16.gmra.mxu0 %v1724
      %v2051 = vpop.f32.mrf.mxu0
      %v2052 = vadd.f32 0.0, %v2051
      %v2053 = vpop.f32.mrf.mxu0
      %v2054 = vpop.f32.mrf.mxu0
      %v2055 = vadd.f32 0.0, %v2054
      %v2056 = vpop.f32.mrf.mxu0
      %2057 = vmatprep.mubr.bf16.mxu0 0
      %2058 = vmatmul.mubr.bf16.gmra.mxu0 %v1725
      %v2059 = vpop.f32.mrf.mxu0
      %v2060 = vadd.f32 0.0, %v2059
      %v2061 = vpop.f32.mrf.mxu0
      %v2062 = vpop.f32.mrf.mxu0
      %v2063 = vadd.f32 0.0, %v2062
      %v2064 = vpop.f32.mrf.mxu0
      %2065 = vmatprep.mubr.bf16.mxu0 0
      %2066 = vmatmul.mubr.bf16.gmra.mxu0 %v1726
      %v2067 = vpop.f32.mrf.mxu0
      %v2068 = vadd.f32 0.0, %v2067
      %v2069 = vpop.f32.mrf.mxu0
      %v2070 = vpop.f32.mrf.mxu0
      %v2071 = vadd.f32 0.0, %v2070
      %v2072 = vpop.f32.mrf.mxu0
      %2073 = vmatprep.mubr.bf16.mxu0 0
      %2074 = vmatmul.mubr.bf16.gmra.mxu0 %v1727
      %v2075 = vpop.f32.mrf.mxu0
      %v2076 = vadd.f32 0.0, %v2075
      %v2077 = vpop.f32.mrf.mxu0
      %v2078 = vpop.f32.mrf.mxu0
      %v2079 = vadd.f32 0.0, %v2078
      %v2080 = vpop.f32.mrf.mxu0
      %2081 = vmatprep.mubr.bf16.mxu0 0
      %2082 = vmatmul.mubr.bf16.gmra.mxu0 %v1728
      %v2083 = vpop.f32.mrf.mxu0
      %v2084 = vadd.f32 0.0, %v2083
      %v2085 = vpop.f32.mrf.mxu0
      %v2086 = vpop.f32.mrf.mxu0
      %v2087 = vpop.f32.mrf.mxu0
      %2088 = vdwg.mxu0
      %vm2089 = vcmask 23552
      %2090 = vst.msk [vmem:[%s253] sm:$0xff] %vm2089, %v1828
      %2091 = vst.msk [vmem:[%s253 + $0x8] sm:$0xff] %vm2089, %v1831
      %2092 = vst.msk [vmem:[%s253 + $0x10] sm:$0xff] %vm2089, %v1836
      %2093 = vst.msk [vmem:[%s253 + $0x18] sm:$0xff] %vm2089, %v1839
      %2094 = vst.msk [vmem:[%s253 + $0x20] sm:$0xff] %vm2089, %v1844
      %2095 = vst.msk [vmem:[%s253 + $0x28] sm:$0xff] %vm2089, %v1847
      %2096 = vst.msk [vmem:[%s253 + $0x30] sm:$0xff] %vm2089, %v1852
      %2097 = vst.msk [vmem:[%s253 + $0x38] sm:$0xff] %vm2089, %v1855
      %2098 = vst.msk [vmem:[%s253 + $0x40] sm:$0xff] %vm2089, %v1860
      %2099 = vst.msk [vmem:[%s253 + $0x48] sm:$0xff] %vm2089, %v1863
      %2100 = vst.msk [vmem:[%s253 + $0x50] sm:$0xff] %vm2089, %v1868
      %2101 = vst.msk [vmem:[%s253 + $0x58] sm:$0xff] %vm2089, %v1871
      %2102 = vst.msk [vmem:[%s253 + $0x60] sm:$0xff] %vm2089, %v1876
      %2103 = vst.msk [vmem:[%s253 + $0x68] sm:$0xff] %vm2089, %v1879
      %2104 = vst.msk [vmem:[%s253 + $0x70] sm:$0xff] %vm2089, %v1884
      %2105 = vst.msk [vmem:[%s253 + $0x78] sm:$0xff] %vm2089, %v1887
      %2106 = vst.msk [vmem:[%s253 + $0x80] sm:$0xff] %vm2089, %v1892
      %2107 = vst.msk [vmem:[%s253 + $0x88] sm:$0xff] %vm2089, %v1895
      %2108 = vst.msk [vmem:[%s253 + $0x90] sm:$0xff] %vm2089, %v1900
      %2109 = vst.msk [vmem:[%s253 + $0x98] sm:$0xff] %vm2089, %v1903
      %2110 = vst.msk [vmem:[%s253 + $0xa0] sm:$0xff] %vm2089, %v1908
      %2111 = vst.msk [vmem:[%s253 + $0xa8] sm:$0xff] %vm2089, %v1911
      %2112 = vst.msk [vmem:[%s253 + $0xb0] sm:$0xff] %vm2089, %v1916
      %2113 = vst.msk [vmem:[%s253 + $0xb8] sm:$0xff] %vm2089, %v1919
      %2114 = vst.msk [vmem:[%s253 + $0xc0] sm:$0xff] %vm2089, %v1924
      %2115 = vst.msk [vmem:[%s253 + $0xc8] sm:$0xff] %vm2089, %v1927
      %2116 = vst.msk [vmem:[%s253 + $0xd0] sm:$0xff] %vm2089, %v1932
      %2117 = vst.msk [vmem:[%s253 + $0xd8] sm:$0xff] %vm2089, %v1935
      %2118 = vst.msk [vmem:[%s253 + $0xe0] sm:$0xff] %vm2089, %v1940
      %2119 = vst.msk [vmem:[%s253 + $0xe8] sm:$0xff] %vm2089, %v1943
      %2120 = vst.msk [vmem:[%s253 + $0xf0] sm:$0xff] %vm2089, %v1948
      %2121 = vst.msk [vmem:[%s253 + $0xf8] sm:$0xff] %vm2089, %v1951
      %2122 = vst.msk [vmem:[%s253 + $0x100] sm:$0xff] %vm2089, %v1956
      %2123 = vst.msk [vmem:[%s253 + $0x108] sm:$0xff] %vm2089, %v1959
      %2124 = vst.msk [vmem:[%s253 + $0x110] sm:$0xff] %vm2089, %v1964
      %2125 = vst.msk [vmem:[%s253 + $0x118] sm:$0xff] %vm2089, %v1967
      %2126 = vst.msk [vmem:[%s253 + $0x120] sm:$0xff] %vm2089, %v1972
      %2127 = vst.msk [vmem:[%s253 + $0x128] sm:$0xff] %vm2089, %v1975
      %2128 = vst.msk [vmem:[%s253 + $0x130] sm:$0xff] %vm2089, %v1980
      %2129 = vst.msk [vmem:[%s253 + $0x138] sm:$0xff] %vm2089, %v1983
      %2130 = vst.msk [vmem:[%s253 + $0x140] sm:$0xff] %vm2089, %v1988
      %2131 = vst.msk [vmem:[%s253 + $0x148] sm:$0xff] %vm2089, %v1991
      %2132 = vst.msk [vmem:[%s253 + $0x150] sm:$0xff] %vm2089, %v1996
      %2133 = vst.msk [vmem:[%s253 + $0x158] sm:$0xff] %vm2089, %v1999
      %2134 = vst.msk [vmem:[%s253 + $0x160] sm:$0xff] %vm2089, %v2004
      %2135 = vst.msk [vmem:[%s253 + $0x168] sm:$0xff] %vm2089, %v2007
      %2136 = vst.msk [vmem:[%s253 + $0x170] sm:$0xff] %vm2089, %v2012
      %2137 = vst.msk [vmem:[%s253 + $0x178] sm:$0xff] %vm2089, %v2015
      %2138 = vst.msk [vmem:[%s253 + $0x180] sm:$0xff] %vm2089, %v2020
      %2139 = vst.msk [vmem:[%s253 + $0x188] sm:$0xff] %vm2089, %v2023
      %2140 = vst.msk [vmem:[%s253 + $0x190] sm:$0xff] %vm2089, %v2028
      %2141 = vst.msk [vmem:[%s253 + $0x198] sm:$0xff] %vm2089, %v2031
      %2142 = vst.msk [vmem:[%s253 + $0x1a0] sm:$0xff] %vm2089, %v2036
      %2143 = vst.msk [vmem:[%s253 + $0x1a8] sm:$0xff] %vm2089, %v2039
      %2144 = vst.msk [vmem:[%s253 + $0x1b0] sm:$0xff] %vm2089, %v2044
      %2145 = vst.msk [vmem:[%s253 + $0x1b8] sm:$0xff] %vm2089, %v2047
      %2146 = vst.msk [vmem:[%s253 + $0x1c0] sm:$0xff] %vm2089, %v2052
      %2147 = vst.msk [vmem:[%s253 + $0x1c8] sm:$0xff] %vm2089, %v2055
      %2148 = vst.msk [vmem:[%s253 + $0x1d0] sm:$0xff] %vm2089, %v2060
      %2149 = vst.msk [vmem:[%s253 + $0x1d8] sm:$0xff] %vm2089, %v2063
      %2150 = vst.msk [vmem:[%s253 + $0x1e0] sm:$0xff] %vm2089, %v2068
      %2151 = vst.msk [vmem:[%s253 + $0x1e8] sm:$0xff] %vm2089, %v2071
      %2152 = vst.msk [vmem:[%s253 + $0x1f0] sm:$0xff] %vm2089, %v2076
      %2153 = vst.msk [vmem:[%s253 + $0x1f8] sm:$0xff] %vm2089, %v2079
      %2154 = vst.msk [vmem:[%s253 + $0x200] sm:$0xff] %vm2089, %v2084
      %s2155 = smul.u32 65, %s17
      %p2156 = scmp.lt.s32.totalorder %s2155, 129
      %s2157 = scalar_select %p2156, %s2155, 129
      %s2158 = smul.addr %s2157, 8
      %s2159 = scalar_lea.vmem %s6, %s2158
      // Predicated region
      $region45: #{tpu_custom_call.1} parent=43 // pred_check
        %p2160 = pneg %p166
      $region46: #{tpu_custom_call.1} parent=43 // pred_check_branch
        %2162 = sbr.rel (%p2160) target = $region48
      $region47: #{tpu_custom_call.1} parent=43 // pred_region
        %s2163 = smul.u32 65, %s17
      $region48: #{tpu_custom_call.1} parent=43 // pred_fallthru
        _
    $region44: #{tpu_custom_call.1} parent=5 // pred_fallthru
      _
    %p2164 = scmp.le.s32.totalorder 2, %s12
    // Predicated region
    $region49: #{tpu_custom_call.1} parent=5 // pred_check
      %p2165 = pneg %p2164
    $region50: #{tpu_custom_call.1} parent=5 // pred_check_branch
      %2167 = sbr.rel (%p2165) target = $region52
    $region51: #{tpu_custom_call.1} parent=5 // pred_region
      %s2168 = ssub.s32 %s12, 2
      // Predicated region
      $region53: #{tpu_custom_call.1} parent=51 // pred_check
        %p2169 = pneg %p172
      $region54: #{tpu_custom_call.1} parent=51 // pred_check_branch
        %2171 = sbr.rel (%p2169) target = $region56
      $region55: #{tpu_custom_call.1} parent=51 // pred_region
        %s2172 = smul.u32 65, %s18
        %p2173 = scmp.lt.s32.totalorder %s2172, 129
        %s2174 = scalar_select %p2173, %s2172, 129
        %s2175 = smul.addr %s2174, 8
        %s2176 = scalar_lea.vmem %s6, %s2175
      $region56: #{tpu_custom_call.1} parent=51 // pred_fallthru
        _
    $region52: #{tpu_custom_call.1} parent=5 // pred_fallthru
      _
  $region6: #{tpu_custom_call.1} parent=0 // loop_footer
    %s16 = sadd.s32 1, %s12
  $region7: #{tpu_custom_call.1} parent=0 // loop_footer_branch
    %11 = sbr.rel target = $region3
  $region8: #{tpu_custom_call.1} parent=0 // loop_exit
    _

</llo_original>
